<compile_context>
chip_gen: v7x
topology: tpu7x:2x2x1
jax: 0.10.0
libtpu: 0.0.40
codegen_flags: <defaults>
</compile_context>

<pallas_src>
import functools

import jax
import jax.numpy as jnp
from jax import lax
from jax.experimental import pallas as pl
from jax.experimental.pallas import tpu as pltpu


def _attention_kernel(x_ref, wq_ref, wk_ref, wv_ref, wout_ref, o_ref,
                      *, heads, compute_dtype):
    # x_ref:    (1, N, Cp)        one batch element's tokens
    # wq_ref:   (heads, Cp, d)    head-major, scale folded in, VMEM-resident
    # wk_ref:   (heads, Cp, d)
    # wv_ref:   (heads, Cp, d)
    # wout_ref: (heads, d, Cp)    per-head slice of W_out
    # o_ref:    (1, N, Cp)
    x = x_ref[0]                                        # [N, Cp] (input dtype)
    n, cp = x.shape

    acc = jnp.zeros((n, cp), jnp.float32)               # output-proj accumulator

    for h in range(heads):                               # static unroll (heads is small)
        wq = wq_ref[h]                                   # [Cp, d] cheap leading-axis slice
        wk = wk_ref[h]
        wv = wv_ref[h]
        wout = wout_ref[h]                               # [d, Cp]

        # Per-head projections: MXU fed in input dtype, accumulate in f32.
        q = jnp.dot(x, wq, preferred_element_type=jnp.float32)      # [N, d]
        k = jnp.dot(x, wk, preferred_element_type=jnp.float32)      # [N, d]
        v = jnp.dot(x, wv, preferred_element_type=jnp.float32)      # [N, d]

        # Scores: contract over d directly (no materialized k.T / XLU transpose).
        dots = lax.dot_general(
            q.astype(compute_dtype), k.astype(compute_dtype),
            dimension_numbers=(((1,), (1,)), ((), ())),
            preferred_element_type=jnp.float32)                      # [N, N] f32

        # Softmax in f32 (scale already folded into W_q).
        dots = dots - jnp.max(dots, axis=-1, keepdims=True)
        e = jnp.exp(dots)
        s = jnp.sum(e, axis=-1, keepdims=True)
        r = pl.reciprocal(s, approx=True)        # EUP vrcp (otherwise-idle slot)
        r = r * (2.0 - s * r)                    # one Newton step on [N,1]: ~f32 exact
        attn = e * r                             # dropout(p=0) == identity

        out_h = jnp.dot(attn.astype(compute_dtype), v.astype(compute_dtype),
                        preferred_element_type=jnp.float32)          # [N, d]

        # Streamed output projection: this head's W_out slice, accumulated in f32.
        acc = acc + jnp.dot(out_h.astype(compute_dtype), wout,
                            preferred_element_type=jnp.float32)      # [N, Cp]

    o_ref[0] = acc.astype(o_ref.dtype)           # single lane-dense store per batch


def _round_up(a, m):
    return (a + m - 1) // m * m


def attention_pallas(x, w_qkv, w_out, *, heads, dim_head):
    """Forward of the PyTorch `Attention` module.

    x:     [B, N, C]
    w_qkv: [3*inner, C]  torch Linear weight layout (no bias)
    w_out: [C, inner]    torch Linear weight layout (no bias)
    """
    B, N, C = x.shape
    inner = heads * dim_head
    d = dim_head
    scale = dim_head ** (-0.5)
    dtype = x.dtype

    # ---- one-time head-major weight re-layout (outside the kernel) ---------
    # q/k/v rows of w_qkv are laid out (h d) along features; fold scale into Wq.
    wq = w_qkv[:inner].reshape(heads, d, C).transpose(0, 2, 1) * scale   # [H, C, d]
    wk = w_qkv[inner:2 * inner].reshape(heads, d, C).transpose(0, 2, 1)  # [H, C, d]
    wv = w_qkv[2 * inner:].reshape(heads, d, C).transpose(0, 2, 1)       # [H, C, d]
    wo = w_out.reshape(C, heads, d).transpose(1, 2, 0)                   # [H, d, C]

    # ---- pad channel dim to a lane-dense multiple of 128 -------------------
    Cp = _round_up(C, 128)
    if Cp != C:
        pad = Cp - C
        x_in = jnp.pad(x, ((0, 0), (0, 0), (0, pad)))
        wq = jnp.pad(wq, ((0, 0), (0, pad), (0, 0)))   # padded C is a contraction dim
        wk = jnp.pad(wk, ((0, 0), (0, pad), (0, 0)))
        wv = jnp.pad(wv, ((0, 0), (0, pad), (0, 0)))
        wo = jnp.pad(wo, ((0, 0), (0, 0), (0, pad)))   # padded output channels -> sliced off
    else:
        x_in = x
    wq, wk, wv, wo = (t.astype(dtype) for t in (wq, wk, wv, wo))

    kernel = functools.partial(_attention_kernel, heads=heads, compute_dtype=dtype)

    out = pl.pallas_call(
        kernel,
        out_shape=jax.ShapeDtypeStruct((B, N, Cp), dtype),
        grid_spec=pltpu.PrefetchScalarGridSpec(
            num_scalar_prefetch=0,
            grid=(B,),
            in_specs=[
                pl.BlockSpec((1, N, Cp), lambda b: (b, 0, 0)),        # x (one batch / step)
                pl.BlockSpec((heads, Cp, d), lambda b: (0, 0, 0)),    # W_q (VMEM-resident)
                pl.BlockSpec((heads, Cp, d), lambda b: (0, 0, 0)),    # W_k
                pl.BlockSpec((heads, Cp, d), lambda b: (0, 0, 0)),    # W_v
                pl.BlockSpec((heads, d, Cp), lambda b: (0, 0, 0)),    # W_out (head-major)
            ],
            out_specs=pl.BlockSpec((1, N, Cp), lambda b: (b, 0, 0)),
        ),
        compiler_params=pltpu.CompilerParams(
            dimension_semantics=("parallel",),
            vmem_limit_bytes=64 * 1024 * 1024,
        ),
    )(x_in, wq, wk, wv, wo)

    return out[..., :C] if Cp != C else out


def attention_reference(x, w_qkv, w_out, *, heads, dim_head):
    """Pure-JAX reference matching the PyTorch forward."""
    B, N, C = x.shape
    inner = heads * dim_head
    scale = dim_head ** (-0.5)
    qkv = jnp.einsum("bnc,oc->bno", x, w_qkv)           # Linear, no bias
    q, k, v = jnp.split(qkv, 3, axis=-1)

    def to_heads(t):
        return jnp.transpose(t.reshape(B, N, heads, dim_head), (0, 2, 1, 3))

    q, k, v = map(to_heads, (q, k, v))
    dots = jnp.einsum("bhnd,bhmd->bhnm", q, k) * scale
    attn = jax.nn.softmax(dots, axis=-1)
    out = jnp.einsum("bhnm,bhmd->bhnd", attn, v)
    out = jnp.transpose(out, (0, 2, 1, 3)).reshape(B, N, inner)
    return jnp.einsum("bni,ci->bnc", out, w_out)


if __name__ == "__main__":
    # Small shapes consistent with the module's forward: x is [B, N, dim].
    B, N, dim = 2, 8, 32
    heads, dim_head = 4, 16
    inner_dim = heads * dim_head  # 64; project_out = True

    key = jax.random.PRNGKey(0)
    kx, kqkv, kout = jax.random.split(key, 3)

    x = jax.random.normal(kx, (B, N, dim), dtype=jnp.float32)
    # Deterministic parameter init (nn.Linear-style scale), torch weight layout [out, in].
    w_qkv = jax.random.uniform(
        kqkv, (inner_dim * 3, dim), minval=-1.0, maxval=1.0, dtype=jnp.float32
    ) * (dim ** -0.5)
    w_out = jax.random.uniform(
        kout, (dim, inner_dim), minval=-1.0, maxval=1.0, dtype=jnp.float32
    ) * (inner_dim ** -0.5)

    out = attention_pallas(x, w_qkv, w_out, heads=heads, dim_head=dim_head)
    out = jax.block_until_ready(out)

    ref = attention_reference(x, w_qkv, w_out, heads=heads, dim_head=dim_head)
    assert out.shape == (B, N, dim)
    assert jnp.allclose(out, ref, atol=2e-4, rtol=2e-4), "mismatch vs reference"

    print("KERNEL_OK")
</pallas_src>

<mosaic_0001>
module attributes {stable_mosaic.version = 11 : i64} {
  func.func @_attention_kernel(%arg0: i32, %arg1: memref<1x8x128xf32, #tpu.memory_space<vmem>>, %arg2: memref<4x128x16xf32, #tpu.memory_space<vmem>>, %arg3: memref<4x128x16xf32, #tpu.memory_space<vmem>>, %arg4: memref<4x128x16xf32, #tpu.memory_space<vmem>>, %arg5: memref<4x16x128xf32, #tpu.memory_space<vmem>>, %arg6: memref<1x8x128xf32, #tpu.memory_space<vmem>>) attributes {dimension_semantics = [#tpu.dimension_semantics<parallel>], iteration_bounds = array<i64: 2>, scalar_prefetch = 0 : i64, scratch_operands = 0 : i64, tpu.core_type = #tpu.core_type<tc>, window_params = [{transform_indices = @transform_0, window_bounds = array<i64: 1, 8, 128>}, {pipeline_mode = #tpu.pipeline_mode<synchronous>, transform_indices = @transform_1, window_bounds = array<i64: 4, 128, 16>}, {pipeline_mode = #tpu.pipeline_mode<synchronous>, transform_indices = @transform_2, window_bounds = array<i64: 4, 128, 16>}, {pipeline_mode = #tpu.pipeline_mode<synchronous>, transform_indices = @transform_3, window_bounds = array<i64: 4, 128, 16>}, {pipeline_mode = #tpu.pipeline_mode<synchronous>, transform_indices = @transform_4, window_bounds = array<i64: 4, 16, 128>}, {transform_indices = @transform_5, window_bounds = array<i64: 1, 8, 128>}]} {
    %c0 = arith.constant 0 : index
    %c0_0 = arith.constant 0 : index
    %c0_1 = arith.constant 0 : index
    %0 = vector.load %arg1[%c0, %c0_0, %c0_1] : memref<1x8x128xf32, #tpu.memory_space<vmem>>, vector<1x8x128xf32>
    %1 = vector.shape_cast %0 : vector<1x8x128xf32> to vector<8x128xf32>
    %cst = arith.constant 0.000000e+00 : f32
    %2 = vector.broadcast %cst : f32 to vector<8x128xf32>
    %c0_2 = arith.constant 0 : index
    %c0_3 = arith.constant 0 : index
    %c0_4 = arith.constant 0 : index
    %3 = vector.load %arg2[%c0_2, %c0_3, %c0_4] : memref<4x128x16xf32, #tpu.memory_space<vmem>>, vector<1x128x16xf32>
    %4 = vector.shape_cast %3 : vector<1x128x16xf32> to vector<128x16xf32>
    %c0_5 = arith.constant 0 : index
    %c0_6 = arith.constant 0 : index
    %c0_7 = arith.constant 0 : index
    %5 = vector.load %arg3[%c0_5, %c0_6, %c0_7] : memref<4x128x16xf32, #tpu.memory_space<vmem>>, vector<1x128x16xf32>
    %6 = vector.shape_cast %5 : vector<1x128x16xf32> to vector<128x16xf32>
    %c0_8 = arith.constant 0 : index
    %c0_9 = arith.constant 0 : index
    %c0_10 = arith.constant 0 : index
    %7 = vector.load %arg4[%c0_8, %c0_9, %c0_10] : memref<4x128x16xf32, #tpu.memory_space<vmem>>, vector<1x128x16xf32>
    %8 = vector.shape_cast %7 : vector<1x128x16xf32> to vector<128x16xf32>
    %c0_11 = arith.constant 0 : index
    %c0_12 = arith.constant 0 : index
    %c0_13 = arith.constant 0 : index
    %9 = vector.load %arg5[%c0_11, %c0_12, %c0_13] : memref<4x16x128xf32, #tpu.memory_space<vmem>>, vector<1x16x128xf32>
    %10 = vector.shape_cast %9 : vector<1x16x128xf32> to vector<16x128xf32>
    %cst_14 = arith.constant dense<0.000000e+00> : vector<8x16xf32>
    %11 = tpu.matmul %1, %4, %cst_14 {dimension_numbers = #tpu.dot_dimension_numbers<[1], [0], [0], [1], [0, 0, 1, 1], [], []>} : vector<8x128xf32>, vector<128x16xf32>, vector<8x16xf32> -> vector<8x16xf32>
    %cst_15 = arith.constant dense<0.000000e+00> : vector<8x16xf32>
    %12 = tpu.matmul %1, %6, %cst_15 {dimension_numbers = #tpu.dot_dimension_numbers<[1], [0], [0], [1], [0, 0, 1, 1], [], []>} : vector<8x128xf32>, vector<128x16xf32>, vector<8x16xf32> -> vector<8x16xf32>
    %cst_16 = arith.constant dense<0.000000e+00> : vector<8x16xf32>
    %13 = tpu.matmul %1, %8, %cst_16 {dimension_numbers = #tpu.dot_dimension_numbers<[1], [0], [0], [1], [0, 0, 1, 1], [], []>} : vector<8x128xf32>, vector<128x16xf32>, vector<8x16xf32> -> vector<8x16xf32>
    %cst_17 = arith.constant dense<0.000000e+00> : vector<8x8xf32>
    %14 = tpu.matmul %11, %12, %cst_17 {dimension_numbers = #tpu.dot_dimension_numbers<[1], [1], [0], [0], [0, 0, 1, 0], [], []>} : vector<8x16xf32>, vector<8x16xf32>, vector<8x8xf32> -> vector<8x8xf32>
    %cst_18 = arith.constant dense<0xFF800000> : vector<8xf32>
    %15 = vector.multi_reduction <maximumf>, %14, %cst_18 [1] : vector<8x8xf32> to vector<8xf32>
    %16 = vector.shape_cast %15 : vector<8xf32> to vector<8x1xf32>
    %17 = vector.broadcast %16 : vector<8x1xf32> to vector<8x8xf32>
    %18 = arith.subf %14, %17 : vector<8x8xf32>
    %19 = math.exp %18 : vector<8x8xf32>
    %cst_19 = arith.constant dense<0.000000e+00> : vector<8xf32>
    %20 = vector.multi_reduction <add>, %19, %cst_19 [1] : vector<8x8xf32> to vector<8xf32>
    %21 = vector.shape_cast %20 : vector<8xf32> to vector<8x1xf32>
    %22 = tpu.reciprocal %21 {approx = true} : vector<8x1xf32> -> vector<8x1xf32>
    %23 = arith.mulf %21, %22 : vector<8x1xf32>
    %cst_20 = arith.constant 2.000000e+00 : f32
    %24 = vector.broadcast %cst_20 : f32 to vector<8x1xf32>
    %25 = arith.subf %24, %23 : vector<8x1xf32>
    %26 = arith.mulf %22, %25 : vector<8x1xf32>
    %27 = vector.broadcast %26 : vector<8x1xf32> to vector<8x8xf32>
    %28 = arith.mulf %19, %27 : vector<8x8xf32>
    %cst_21 = arith.constant dense<0.000000e+00> : vector<8x16xf32>
    %29 = tpu.matmul %28, %13, %cst_21 {dimension_numbers = #tpu.dot_dimension_numbers<[1], [0], [0], [1], [0, 0, 1, 1], [], []>} : vector<8x8xf32>, vector<8x16xf32>, vector<8x16xf32> -> vector<8x16xf32>
    %cst_22 = arith.constant dense<0.000000e+00> : vector<8x128xf32>
    %30 = tpu.matmul %29, %10, %cst_22 {dimension_numbers = #tpu.dot_dimension_numbers<[1], [0], [0], [1], [0, 0, 1, 1], [], []>} : vector<8x16xf32>, vector<16x128xf32>, vector<8x128xf32> -> vector<8x128xf32>
    %31 = arith.addf %2, %30 : vector<8x128xf32>
    %c1 = arith.constant 1 : index
    %c0_23 = arith.constant 0 : index
    %c0_24 = arith.constant 0 : index
    %32 = vector.load %arg2[%c1, %c0_23, %c0_24] : memref<4x128x16xf32, #tpu.memory_space<vmem>>, vector<1x128x16xf32>
    %33 = vector.shape_cast %32 : vector<1x128x16xf32> to vector<128x16xf32>
    %c1_25 = arith.constant 1 : index
    %c0_26 = arith.constant 0 : index
    %c0_27 = arith.constant 0 : index
    %34 = vector.load %arg3[%c1_25, %c0_26, %c0_27] : memref<4x128x16xf32, #tpu.memory_space<vmem>>, vector<1x128x16xf32>
    %35 = vector.shape_cast %34 : vector<1x128x16xf32> to vector<128x16xf32>
    %c1_28 = arith.constant 1 : index
    %c0_29 = arith.constant 0 : index
    %c0_30 = arith.constant 0 : index
    %36 = vector.load %arg4[%c1_28, %c0_29, %c0_30] : memref<4x128x16xf32, #tpu.memory_space<vmem>>, vector<1x128x16xf32>
    %37 = vector.shape_cast %36 : vector<1x128x16xf32> to vector<128x16xf32>
    %c1_31 = arith.constant 1 : index
    %c0_32 = arith.constant 0 : index
    %c0_33 = arith.constant 0 : index
    %38 = vector.load %arg5[%c1_31, %c0_32, %c0_33] : memref<4x16x128xf32, #tpu.memory_space<vmem>>, vector<1x16x128xf32>
    %39 = vector.shape_cast %38 : vector<1x16x128xf32> to vector<16x128xf32>
    %cst_34 = arith.constant dense<0.000000e+00> : vector<8x16xf32>
    %40 = tpu.matmul %1, %33, %cst_34 {dimension_numbers = #tpu.dot_dimension_numbers<[1], [0], [0], [1], [0, 0, 1, 1], [], []>} : vector<8x128xf32>, vector<128x16xf32>, vector<8x16xf32> -> vector<8x16xf32>
    %cst_35 = arith.constant dense<0.000000e+00> : vector<8x16xf32>
    %41 = tpu.matmul %1, %35, %cst_35 {dimension_numbers = #tpu.dot_dimension_numbers<[1], [0], [0], [1], [0, 0, 1, 1], [], []>} : vector<8x128xf32>, vector<128x16xf32>, vector<8x16xf32> -> vector<8x16xf32>
    %cst_36 = arith.constant dense<0.000000e+00> : vector<8x16xf32>
    %42 = tpu.matmul %1, %37, %cst_36 {dimension_numbers = #tpu.dot_dimension_numbers<[1], [0], [0], [1], [0, 0, 1, 1], [], []>} : vector<8x128xf32>, vector<128x16xf32>, vector<8x16xf32> -> vector<8x16xf32>
    %cst_37 = arith.constant dense<0.000000e+00> : vector<8x8xf32>
    %43 = tpu.matmul %40, %41, %cst_37 {dimension_numbers = #tpu.dot_dimension_numbers<[1], [1], [0], [0], [0, 0, 1, 0], [], []>} : vector<8x16xf32>, vector<8x16xf32>, vector<8x8xf32> -> vector<8x8xf32>
    %cst_38 = arith.constant dense<0xFF800000> : vector<8xf32>
    %44 = vector.multi_reduction <maximumf>, %43, %cst_38 [1] : vector<8x8xf32> to vector<8xf32>
    %45 = vector.shape_cast %44 : vector<8xf32> to vector<8x1xf32>
    %46 = vector.broadcast %45 : vector<8x1xf32> to vector<8x8xf32>
    %47 = arith.subf %43, %46 : vector<8x8xf32>
    %48 = math.exp %47 : vector<8x8xf32>
    %cst_39 = arith.constant dense<0.000000e+00> : vector<8xf32>
    %49 = vector.multi_reduction <add>, %48, %cst_39 [1] : vector<8x8xf32> to vector<8xf32>
    %50 = vector.shape_cast %49 : vector<8xf32> to vector<8x1xf32>
    %51 = tpu.reciprocal %50 {approx = true} : vector<8x1xf32> -> vector<8x1xf32>
    %52 = arith.mulf %50, %51 : vector<8x1xf32>
    %cst_40 = arith.constant 2.000000e+00 : f32
    %53 = vector.broadcast %cst_40 : f32 to vector<8x1xf32>
    %54 = arith.subf %53, %52 : vector<8x1xf32>
    %55 = arith.mulf %51, %54 : vector<8x1xf32>
    %56 = vector.broadcast %55 : vector<8x1xf32> to vector<8x8xf32>
    %57 = arith.mulf %48, %56 : vector<8x8xf32>
    %cst_41 = arith.constant dense<0.000000e+00> : vector<8x16xf32>
    %58 = tpu.matmul %57, %42, %cst_41 {dimension_numbers = #tpu.dot_dimension_numbers<[1], [0], [0], [1], [0, 0, 1, 1], [], []>} : vector<8x8xf32>, vector<8x16xf32>, vector<8x16xf32> -> vector<8x16xf32>
    %cst_42 = arith.constant dense<0.000000e+00> : vector<8x128xf32>
    %59 = tpu.matmul %58, %39, %cst_42 {dimension_numbers = #tpu.dot_dimension_numbers<[1], [0], [0], [1], [0, 0, 1, 1], [], []>} : vector<8x16xf32>, vector<16x128xf32>, vector<8x128xf32> -> vector<8x128xf32>
    %60 = arith.addf %31, %59 : vector<8x128xf32>
    %c2 = arith.constant 2 : index
    %c0_43 = arith.constant 0 : index
    %c0_44 = arith.constant 0 : index
    %61 = vector.load %arg2[%c2, %c0_43, %c0_44] : memref<4x128x16xf32, #tpu.memory_space<vmem>>, vector<1x128x16xf32>
    %62 = vector.shape_cast %61 : vector<1x128x16xf32> to vector<128x16xf32>
    %c2_45 = arith.constant 2 : index
    %c0_46 = arith.constant 0 : index
    %c0_47 = arith.constant 0 : index
    %63 = vector.load %arg3[%c2_45, %c0_46, %c0_47] : memref<4x128x16xf32, #tpu.memory_space<vmem>>, vector<1x128x16xf32>
    %64 = vector.shape_cast %63 : vector<1x128x16xf32> to vector<128x16xf32>
    %c2_48 = arith.constant 2 : index
    %c0_49 = arith.constant 0 : index
    %c0_50 = arith.constant 0 : index
    %65 = vector.load %arg4[%c2_48, %c0_49, %c0_50] : memref<4x128x16xf32, #tpu.memory_space<vmem>>, vector<1x128x16xf32>
    %66 = vector.shape_cast %65 : vector<1x128x16xf32> to vector<128x16xf32>
    %c2_51 = arith.constant 2 : index
    %c0_52 = arith.constant 0 : index
    %c0_53 = arith.constant 0 : index
    %67 = vector.load %arg5[%c2_51, %c0_52, %c0_53] : memref<4x16x128xf32, #tpu.memory_space<vmem>>, vector<1x16x128xf32>
    %68 = vector.shape_cast %67 : vector<1x16x128xf32> to vector<16x128xf32>
    %cst_54 = arith.constant dense<0.000000e+00> : vector<8x16xf32>
    %69 = tpu.matmul %1, %62, %cst_54 {dimension_numbers = #tpu.dot_dimension_numbers<[1], [0], [0], [1], [0, 0, 1, 1], [], []>} : vector<8x128xf32>, vector<128x16xf32>, vector<8x16xf32> -> vector<8x16xf32>
    %cst_55 = arith.constant dense<0.000000e+00> : vector<8x16xf32>
    %70 = tpu.matmul %1, %64, %cst_55 {dimension_numbers = #tpu.dot_dimension_numbers<[1], [0], [0], [1], [0, 0, 1, 1], [], []>} : vector<8x128xf32>, vector<128x16xf32>, vector<8x16xf32> -> vector<8x16xf32>
    %cst_56 = arith.constant dense<0.000000e+00> : vector<8x16xf32>
    %71 = tpu.matmul %1, %66, %cst_56 {dimension_numbers = #tpu.dot_dimension_numbers<[1], [0], [0], [1], [0, 0, 1, 1], [], []>} : vector<8x128xf32>, vector<128x16xf32>, vector<8x16xf32> -> vector<8x16xf32>
    %cst_57 = arith.constant dense<0.000000e+00> : vector<8x8xf32>
    %72 = tpu.matmul %69, %70, %cst_57 {dimension_numbers = #tpu.dot_dimension_numbers<[1], [1], [0], [0], [0, 0, 1, 0], [], []>} : vector<8x16xf32>, vector<8x16xf32>, vector<8x8xf32> -> vector<8x8xf32>
    %cst_58 = arith.constant dense<0xFF800000> : vector<8xf32>
    %73 = vector.multi_reduction <maximumf>, %72, %cst_58 [1] : vector<8x8xf32> to vector<8xf32>
    %74 = vector.shape_cast %73 : vector<8xf32> to vector<8x1xf32>
    %75 = vector.broadcast %74 : vector<8x1xf32> to vector<8x8xf32>
    %76 = arith.subf %72, %75 : vector<8x8xf32>
    %77 = math.exp %76 : vector<8x8xf32>
    %cst_59 = arith.constant dense<0.000000e+00> : vector<8xf32>
    %78 = vector.multi_reduction <add>, %77, %cst_59 [1] : vector<8x8xf32> to vector<8xf32>
    %79 = vector.shape_cast %78 : vector<8xf32> to vector<8x1xf32>
    %80 = tpu.reciprocal %79 {approx = true} : vector<8x1xf32> -> vector<8x1xf32>
    %81 = arith.mulf %79, %80 : vector<8x1xf32>
    %cst_60 = arith.constant 2.000000e+00 : f32
    %82 = vector.broadcast %cst_60 : f32 to vector<8x1xf32>
    %83 = arith.subf %82, %81 : vector<8x1xf32>
    %84 = arith.mulf %80, %83 : vector<8x1xf32>
    %85 = vector.broadcast %84 : vector<8x1xf32> to vector<8x8xf32>
    %86 = arith.mulf %77, %85 : vector<8x8xf32>
    %cst_61 = arith.constant dense<0.000000e+00> : vector<8x16xf32>
    %87 = tpu.matmul %86, %71, %cst_61 {dimension_numbers = #tpu.dot_dimension_numbers<[1], [0], [0], [1], [0, 0, 1, 1], [], []>} : vector<8x8xf32>, vector<8x16xf32>, vector<8x16xf32> -> vector<8x16xf32>
    %cst_62 = arith.constant dense<0.000000e+00> : vector<8x128xf32>
    %88 = tpu.matmul %87, %68, %cst_62 {dimension_numbers = #tpu.dot_dimension_numbers<[1], [0], [0], [1], [0, 0, 1, 1], [], []>} : vector<8x16xf32>, vector<16x128xf32>, vector<8x128xf32> -> vector<8x128xf32>
    %89 = arith.addf %60, %88 : vector<8x128xf32>
    %c3 = arith.constant 3 : index
    %c0_63 = arith.constant 0 : index
    %c0_64 = arith.constant 0 : index
    %90 = vector.load %arg2[%c3, %c0_63, %c0_64] : memref<4x128x16xf32, #tpu.memory_space<vmem>>, vector<1x128x16xf32>
    %91 = vector.shape_cast %90 : vector<1x128x16xf32> to vector<128x16xf32>
    %c3_65 = arith.constant 3 : index
    %c0_66 = arith.constant 0 : index
    %c0_67 = arith.constant 0 : index
    %92 = vector.load %arg3[%c3_65, %c0_66, %c0_67] : memref<4x128x16xf32, #tpu.memory_space<vmem>>, vector<1x128x16xf32>
    %93 = vector.shape_cast %92 : vector<1x128x16xf32> to vector<128x16xf32>
    %c3_68 = arith.constant 3 : index
    %c0_69 = arith.constant 0 : index
    %c0_70 = arith.constant 0 : index
    %94 = vector.load %arg4[%c3_68, %c0_69, %c0_70] : memref<4x128x16xf32, #tpu.memory_space<vmem>>, vector<1x128x16xf32>
    %95 = vector.shape_cast %94 : vector<1x128x16xf32> to vector<128x16xf32>
    %c3_71 = arith.constant 3 : index
    %c0_72 = arith.constant 0 : index
    %c0_73 = arith.constant 0 : index
    %96 = vector.load %arg5[%c3_71, %c0_72, %c0_73] : memref<4x16x128xf32, #tpu.memory_space<vmem>>, vector<1x16x128xf32>
    %97 = vector.shape_cast %96 : vector<1x16x128xf32> to vector<16x128xf32>
    %cst_74 = arith.constant dense<0.000000e+00> : vector<8x16xf32>
    %98 = tpu.matmul %1, %91, %cst_74 {dimension_numbers = #tpu.dot_dimension_numbers<[1], [0], [0], [1], [0, 0, 1, 1], [], []>} : vector<8x128xf32>, vector<128x16xf32>, vector<8x16xf32> -> vector<8x16xf32>
    %cst_75 = arith.constant dense<0.000000e+00> : vector<8x16xf32>
    %99 = tpu.matmul %1, %93, %cst_75 {dimension_numbers = #tpu.dot_dimension_numbers<[1], [0], [0], [1], [0, 0, 1, 1], [], []>} : vector<8x128xf32>, vector<128x16xf32>, vector<8x16xf32> -> vector<8x16xf32>
    %cst_76 = arith.constant dense<0.000000e+00> : vector<8x16xf32>
    %100 = tpu.matmul %1, %95, %cst_76 {dimension_numbers = #tpu.dot_dimension_numbers<[1], [0], [0], [1], [0, 0, 1, 1], [], []>} : vector<8x128xf32>, vector<128x16xf32>, vector<8x16xf32> -> vector<8x16xf32>
    %cst_77 = arith.constant dense<0.000000e+00> : vector<8x8xf32>
    %101 = tpu.matmul %98, %99, %cst_77 {dimension_numbers = #tpu.dot_dimension_numbers<[1], [1], [0], [0], [0, 0, 1, 0], [], []>} : vector<8x16xf32>, vector<8x16xf32>, vector<8x8xf32> -> vector<8x8xf32>
    %cst_78 = arith.constant dense<0xFF800000> : vector<8xf32>
    %102 = vector.multi_reduction <maximumf>, %101, %cst_78 [1] : vector<8x8xf32> to vector<8xf32>
    %103 = vector.shape_cast %102 : vector<8xf32> to vector<8x1xf32>
    %104 = vector.broadcast %103 : vector<8x1xf32> to vector<8x8xf32>
    %105 = arith.subf %101, %104 : vector<8x8xf32>
    %106 = math.exp %105 : vector<8x8xf32>
    %cst_79 = arith.constant dense<0.000000e+00> : vector<8xf32>
    %107 = vector.multi_reduction <add>, %106, %cst_79 [1] : vector<8x8xf32> to vector<8xf32>
    %108 = vector.shape_cast %107 : vector<8xf32> to vector<8x1xf32>
    %109 = tpu.reciprocal %108 {approx = true} : vector<8x1xf32> -> vector<8x1xf32>
    %110 = arith.mulf %108, %109 : vector<8x1xf32>
    %cst_80 = arith.constant 2.000000e+00 : f32
    %111 = vector.broadcast %cst_80 : f32 to vector<8x1xf32>
    %112 = arith.subf %111, %110 : vector<8x1xf32>
    %113 = arith.mulf %109, %112 : vector<8x1xf32>
    %114 = vector.broadcast %113 : vector<8x1xf32> to vector<8x8xf32>
    %115 = arith.mulf %106, %114 : vector<8x8xf32>
    %cst_81 = arith.constant dense<0.000000e+00> : vector<8x16xf32>
    %116 = tpu.matmul %115, %100, %cst_81 {dimension_numbers = #tpu.dot_dimension_numbers<[1], [0], [0], [1], [0, 0, 1, 1], [], []>} : vector<8x8xf32>, vector<8x16xf32>, vector<8x16xf32> -> vector<8x16xf32>
    %cst_82 = arith.constant dense<0.000000e+00> : vector<8x128xf32>
    %117 = tpu.matmul %116, %97, %cst_82 {dimension_numbers = #tpu.dot_dimension_numbers<[1], [0], [0], [1], [0, 0, 1, 1], [], []>} : vector<8x16xf32>, vector<16x128xf32>, vector<8x128xf32> -> vector<8x128xf32>
    %118 = arith.addf %89, %117 : vector<8x128xf32>
    %c0_83 = arith.constant 0 : index
    %c0_84 = arith.constant 0 : index
    %c0_85 = arith.constant 0 : index
    %119 = vector.load %arg6[%c0_83, %c0_84, %c0_85] : memref<1x8x128xf32, #tpu.memory_space<vmem>>, vector<1x8x128xf32>
    %120 = vector.shape_cast %119 : vector<1x8x128xf32> to vector<8x128xf32>
    %121 = vector.shape_cast %118 : vector<8x128xf32> to vector<1x8x128xf32>
    tpu.vector_store %arg6[%c0_83, %c0_84, %c0_85], %121 {strides = array<i32>} : memref<1x8x128xf32, #tpu.memory_space<vmem>>, vector<1x8x128xf32>,
    return
  }
  func.func @transform_0(%arg0: i32) -> (i32, i32, i32) {
    %c0_i32 = arith.constant 0 : i32
    %c0_i32_0 = arith.constant 0 : i32
    %c0_i32_1 = arith.constant 0 : i32
    return %arg0, %c0_i32, %c0_i32_0 : i32, i32, i32
  }
  func.func @transform_1(%arg0: i32) -> (i32, i32, i32) {
    %c0_i32 = arith.constant 0 : i32
    %c0_i32_0 = arith.constant 0 : i32
    %c0_i32_1 = arith.constant 0 : i32
    %c0_i32_2 = arith.constant 0 : i32
    return %c0_i32, %c0_i32_0, %c0_i32_1 : i32, i32, i32
  }
  func.func @transform_2(%arg0: i32) -> (i32, i32, i32) {
    %c0_i32 = arith.constant 0 : i32
    %c0_i32_0 = arith.constant 0 : i32
    %c0_i32_1 = arith.constant 0 : i32
    %c0_i32_2 = arith.constant 0 : i32
    return %c0_i32, %c0_i32_0, %c0_i32_1 : i32, i32, i32
  }
  func.func @transform_3(%arg0: i32) -> (i32, i32, i32) {
    %c0_i32 = arith.constant 0 : i32
    %c0_i32_0 = arith.constant 0 : i32
    %c0_i32_1 = arith.constant 0 : i32
    %c0_i32_2 = arith.constant 0 : i32
    return %c0_i32, %c0_i32_0, %c0_i32_1 : i32, i32, i32
  }
  func.func @transform_4(%arg0: i32) -> (i32, i32, i32) {
    %c0_i32 = arith.constant 0 : i32
    %c0_i32_0 = arith.constant 0 : i32
    %c0_i32_1 = arith.constant 0 : i32
    %c0_i32_2 = arith.constant 0 : i32
    return %c0_i32, %c0_i32_0, %c0_i32_1 : i32, i32, i32
  }
  func.func @transform_5(%arg0: i32) -> (i32, i32, i32) {
    %c0_i32 = arith.constant 0 : i32
    %c0_i32_0 = arith.constant 0 : i32
    %c0_i32_1 = arith.constant 0 : i32
    return %arg0, %c0_i32, %c0_i32_0 : i32, i32, i32
  }
}

</mosaic_0001>

<llo_original>
// kernel: tpu_custom_call.1
$region0: #{tpu_custom_call.1}
  #allocation0 [shape = 'u32[]', space=smem, size = 0x4, offset = 0x4, fixed_abs, tag = 'smem constant byte address 0x4 - core index']
  #allocation1 [shape = 'u32[144,128]{1,0:T(1,128)}', space=vmem, size = 0x12000, scoped, tag = 'internal scratch']
  %s0 = inlined_call_operand.hbm [shape: f32[2,8,128], index: 0, kind: input, shape index: {}]
  %s1 = inlined_call_operand.hbm [shape: f32[4,128,16], index: 1, kind: input, shape index: {}]
  %s2 = inlined_call_operand.hbm [shape: f32[4,128,16], index: 2, kind: input, shape index: {}]
  %s3 = inlined_call_operand.hbm [shape: f32[4,128,16], index: 3, kind: input, shape index: {}]
  %s4 = inlined_call_operand.hbm [shape: f32[4,16,128], index: 4, kind: input, shape index: {}]
  %s5 = inlined_call_operand.hbm [shape: f32[2,8,128], index: 5, kind: output, shape index: {}]
  %s6 = sld [smem:[#allocation0]]
  $region73: #{tpu_custom_call.1} parent=0
    _
  %s8 = ssub.s32 1, %s6
  %s9 = scalar_select 0, %s8, %s6
  $region1: #{tpu_custom_call.1} parent=0
    #allocation2 [shape = 'u8[8192]{0}', space=vmem, size = 0x2000, scoped, tag = 'input window, operand 0']
    #allocation3 [shape = 's32[2]{0}', space=sflag, size = 0x8, scoped, tag = 'scoped memory for tpu_custom_call.1']
    #allocation4 [shape = 's32[2]{0}', space=sflag, size = 0x8, scoped, tag = 'scoped memory for tpu_custom_call.1']
    #allocation5 [shape = 'u8[262144]{0}', space=vmem, size = 0x40000, scoped, tag = 'input window, operand 1, single buffered']
    #allocation6 [shape = 's32[1]{0}', space=sflag, size = 0x4, scoped, tag = 'scoped memory for tpu_custom_call.1']
    #allocation7 [shape = 'u8[262144]{0}', space=vmem, size = 0x40000, scoped, tag = 'input window, operand 2, single buffered']
    #allocation8 [shape = 'u8[262144]{0}', space=vmem, size = 0x40000, scoped, tag = 'input window, operand 3, single buffered']
    #allocation9 [shape = 's32[1]{0}', space=sflag, size = 0x4, scoped, tag = 'scoped memory for tpu_custom_call.1']
    #allocation10 [shape = 'u8[32768]{0}', space=vmem, size = 0x8000, scoped, tag = 'input window, operand 4, single buffered']
    #allocation11 [shape = 'u8[8192]{0}', space=vmem, size = 0x2000, scoped, tag = 'output window, operand 0']
    %10 = vsyncpa [#allocation3], 0
    %s11 = scalar_lea.sflag [#allocation3], 1
    %12 = vsyncpa %s11, 0
    %13 = vsyncpa [#allocation6], 0
    %14 = vsyncpa [#allocation9], 0
    %15 = vsyncpa [#allocation4], 0
    %s16 = scalar_lea.sflag [#allocation4], 1
    %17 = vsyncpa %s16, 0
    loop: start=0, step=1, limit=4
    $region2: #{tpu_custom_call.1} parent=1 // loop_pre_header
      _
    $region3: #{tpu_custom_call.1} parent=1 // loop_header
      %s19 = sphi 0, %s23
      %p20 = scmp.ge.s32.totalorder %s19, 4
      %s29 = sphi 0, %s31
      %s32 = sphi 0, %s29
      %s33 = sphi 0, %s32
      %s49 = sphi 0, %s33
      %s53 = sphi 0, %s53
      %s55 = sphi 0, %s53
      %s56 = sphi 0, %s55
      %s70 = sphi 0, %s56
      %s74 = sphi 0, %s74
      %s76 = sphi 0, %s74
      %s77 = sphi 0, %s76
      %s91 = sphi 0, %s77
      %s95 = sphi 0, %s95
      %s97 = sphi 0, %s95
      %s98 = sphi 0, %s97
      %s112 = sphi 0, %s98
      %s116 = sphi 0, %s116
      %s118 = sphi 0, %s116
      %s119 = sphi 0, %s118
      %s133 = sphi 0, %s119
      %s139 = sphi 0, %s141
      %s142 = sphi 0, %s139
      %s143 = sphi 0, %s142
      %s159 = sphi 0, %s143
    $region4: #{tpu_custom_call.1} parent=1 // loop_header_branch
      %22 = sbr.rel (%p20) target = $region8
    $region5: #{tpu_custom_call.1} parent=1 // loop_body
      %s24 = ssub.s32 %s19, 1
      %s25 = ssub.s32 %s19, 2
      %s26 = sadd.s32 %s19, 1
      %s27 = ssub.s32 %s19, %s26
      %p28 = scmp.eq.s32.totalorder %s27, 0
      %s30 = sadd.s32 %s29, 1
      %s31 = scalar_select %p28, %s29, %s30
      %p34 = pneg %p28
      %p35 = scmp.eq.s32.totalorder %s19, 1
      %p36 = por %p34, %p35
      %p37 = scmp.ne.s32.totalorder %s29, %s32
      %p38 = scmp.eq.s32.totalorder %s19, 0
      %p39 = por %p37, %p38
      %p40 = scmp.ne.s32.totalorder %s29, %s32
      %p41 = scmp.eq.s32.totalorder %s24, 1
      %p42 = por %p40, %p41
      %p43 = scmp.ne.s32.totalorder %s32, %s33
      %p44 = scmp.eq.s32.totalorder %s24, 0
      %p45 = por %p43, %p44
      %p46 = scmp.ne.s32.totalorder %s32, %s33
      %p47 = scmp.eq.s32.totalorder %s25, 1
      %p48 = por %p46, %p47
      %p50 = scmp.ne.s32.totalorder %s33, %s49
      %p51 = scmp.eq.s32.totalorder %s25, 0
      %p52 = por %p50, %p51
      %s54 = sadd.s32 %s53, 1
      %p57 = scmp.eq.s32.totalorder %s19, 1
      %p58 = scmp.ne.s32.totalorder %s53, %s55
      %p59 = scmp.eq.s32.totalorder %s19, 0
      %p60 = por %p58, %p59
      %p61 = scmp.ne.s32.totalorder %s53, %s55
      %p62 = scmp.eq.s32.totalorder %s24, 1
      %p63 = por %p61, %p62
      %p64 = scmp.ne.s32.totalorder %s55, %s56
      %p65 = scmp.eq.s32.totalorder %s24, 0
      %p66 = por %p64, %p65
      %p67 = scmp.ne.s32.totalorder %s55, %s56
      %p68 = scmp.eq.s32.totalorder %s25, 1
      %p69 = por %p67, %p68
      %p71 = scmp.ne.s32.totalorder %s56, %s70
      %p72 = scmp.eq.s32.totalorder %s25, 0
      %p73 = por %p71, %p72
      %s75 = sadd.s32 %s74, 1
      %p78 = scmp.eq.s32.totalorder %s19, 1
      %p79 = scmp.ne.s32.totalorder %s74, %s76
      %p80 = scmp.eq.s32.totalorder %s19, 0
      %p81 = por %p79, %p80
      %p82 = scmp.ne.s32.totalorder %s74, %s76
      %p83 = scmp.eq.s32.totalorder %s24, 1
      %p84 = por %p82, %p83
      %p85 = scmp.ne.s32.totalorder %s76, %s77
      %p86 = scmp.eq.s32.totalorder %s24, 0
      %p87 = por %p85, %p86
      %p88 = scmp.ne.s32.totalorder %s76, %s77
      %p89 = scmp.eq.s32.totalorder %s25, 1
      %p90 = por %p88, %p89
      %p92 = scmp.ne.s32.totalorder %s77, %s91
      %p93 = scmp.eq.s32.totalorder %s25, 0
      %p94 = por %p92, %p93
      %s96 = sadd.s32 %s95, 1
      %p99 = scmp.eq.s32.totalorder %s19, 1
      %p100 = scmp.ne.s32.totalorder %s95, %s97
      %p101 = scmp.eq.s32.totalorder %s19, 0
      %p102 = por %p100, %p101
      %p103 = scmp.ne.s32.totalorder %s95, %s97
      %p104 = scmp.eq.s32.totalorder %s24, 1
      %p105 = por %p103, %p104
      %p106 = scmp.ne.s32.totalorder %s97, %s98
      %p107 = scmp.eq.s32.totalorder %s24, 0
      %p108 = por %p106, %p107
      %p109 = scmp.ne.s32.totalorder %s97, %s98
      %p110 = scmp.eq.s32.totalorder %s25, 1
      %p111 = por %p109, %p110
      %p113 = scmp.ne.s32.totalorder %s98, %s112
      %p114 = scmp.eq.s32.totalorder %s25, 0
      %p115 = por %p113, %p114
      %s117 = sadd.s32 %s116, 1
      %p120 = scmp.eq.s32.totalorder %s19, 1
      %p121 = scmp.ne.s32.totalorder %s116, %s118
      %p122 = scmp.eq.s32.totalorder %s19, 0
      %p123 = por %p121, %p122
      %p124 = scmp.ne.s32.totalorder %s116, %s118
      %p125 = scmp.eq.s32.totalorder %s24, 1
      %p126 = por %p124, %p125
      %p127 = scmp.ne.s32.totalorder %s118, %s119
      %p128 = scmp.eq.s32.totalorder %s24, 0
      %p129 = por %p127, %p128
      %p130 = scmp.ne.s32.totalorder %s118, %s119
      %p131 = scmp.eq.s32.totalorder %s25, 1
      %p132 = por %p130, %p131
      %p134 = scmp.ne.s32.totalorder %s119, %s133
      %p135 = scmp.eq.s32.totalorder %s25, 0
      %p136 = por %p134, %p135
      %s137 = ssub.s32 %s19, %s26
      %p138 = scmp.eq.s32.totalorder %s137, 0
      %s140 = sadd.s32 %s139, 1
      %s141 = scalar_select %p138, %s139, %s140
      %p144 = pneg %p138
      %p145 = scmp.eq.s32.totalorder %s19, 1
      %p146 = por %p144, %p145
      %p147 = scmp.ne.s32.totalorder %s139, %s142
      %p148 = scmp.eq.s32.totalorder %s19, 0
      %p149 = por %p147, %p148
      %p150 = scmp.ne.s32.totalorder %s139, %s142
      %p151 = scmp.eq.s32.totalorder %s24, 1
      %p152 = por %p150, %p151
      %p153 = scmp.ne.s32.totalorder %s142, %s143
      %p154 = scmp.eq.s32.totalorder %s24, 0
      %p155 = por %p153, %p154
      %p156 = scmp.ne.s32.totalorder %s142, %s143
      %p157 = scmp.eq.s32.totalorder %s25, 1
      %p158 = por %p156, %p157
      %p160 = scmp.ne.s32.totalorder %s143, %s159
      %p161 = scmp.eq.s32.totalorder %s25, 0
      %p162 = por %p160, %p161
      %p163 = scmp.le.s32.totalorder 1, %s19
      %p164 = scmp.lt.s32.totalorder %s19, 3
      %p165 = pnand %p163, %p164
      %p166 = pneg %p165
      // Predicated region
      $region9: #{tpu_custom_call.1} parent=5 // pred_check
        _
      $region10: #{tpu_custom_call.1} parent=5 // pred_check_branch
        %168 = sbr.rel (%p165) target = $region12
      $region11: #{tpu_custom_call.1} parent=5 // pred_region
        %s169 = ssub.s32 %s19, 1
        // Predicated region
        $region13: #{tpu_custom_call.1} parent=11 // pred_check
          %p170 = pneg %p66
        $region14: #{tpu_custom_call.1} parent=11 // pred_check_branch
          %172 = sbr.rel (%p170) target = $region16
        $region15: #{tpu_custom_call.1} parent=11 // pred_region
          %s174 = ssub.s32 8192, 8192
          %175 = vsyncadd [#allocation6], %s174
          %s176 = sshll.u32 [#allocation5], 4
          %s177 = int_to_ptr.vmem [resolvable:$true] %s176
          %182 = dma.hbm_to_vmem [thread:$0]  %s1, 8192, %s177, [#allocation6], 128, 128, 8
        $region16: #{tpu_custom_call.1} parent=11 // pred_fallthru
          _
        // Predicated region
        $region17: #{tpu_custom_call.1} parent=11 // pred_check
          %p183 = pneg %p87
        $region18: #{tpu_custom_call.1} parent=11 // pred_check_branch
          %185 = sbr.rel (%p183) target = $region20
        $region19: #{tpu_custom_call.1} parent=11 // pred_region
          %s187 = ssub.s32 8192, 8192
          %188 = vsyncadd [#allocation6], %s187
          %s189 = sshll.u32 [#allocation7], 4
          %s190 = int_to_ptr.vmem [resolvable:$true] %s189
          %195 = dma.hbm_to_vmem [thread:$0]  %s2, 8192, %s190, [#allocation6], 128, 128, 8
        $region20: #{tpu_custom_call.1} parent=11 // pred_fallthru
          _
        // Predicated region
        $region21: #{tpu_custom_call.1} parent=11 // pred_check
          %p196 = pneg %p108
        $region22: #{tpu_custom_call.1} parent=11 // pred_check_branch
          %198 = sbr.rel (%p196) target = $region24
        $region23: #{tpu_custom_call.1} parent=11 // pred_region
          %s200 = ssub.s32 8192, 8192
          %201 = vsyncadd [#allocation9], %s200
          %s202 = sshll.u32 [#allocation8], 4
          %s203 = int_to_ptr.vmem [resolvable:$true] %s202
          %208 = dma.hbm_to_vmem [thread:$0]  %s3, 8192, %s203, [#allocation9], 128, 128, 8
        $region24: #{tpu_custom_call.1} parent=11 // pred_fallthru
          _
        // Predicated region
        $region25: #{tpu_custom_call.1} parent=11 // pred_check
          %p209 = pneg %p129
        $region26: #{tpu_custom_call.1} parent=11 // pred_check_branch
          %211 = sbr.rel (%p209) target = $region28
        $region27: #{tpu_custom_call.1} parent=11 // pred_region
          %s213 = ssub.s32 1024, 1024
          %214 = vsyncadd [#allocation9], %s213
          %s215 = sshll.u32 [#allocation10], 4
          %s216 = int_to_ptr.vmem [resolvable:$true] %s215
          %221 = dma.hbm_to_vmem [thread:$0]  %s4, 1024, %s216, [#allocation9], 128, 128, 8
        $region28: #{tpu_custom_call.1} parent=11 // pred_fallthru
          _
      $region12: #{tpu_custom_call.1} parent=5 // pred_fallthru
        _
      %p222 = scmp.lt.s32.totalorder %s19, 2
      // Predicated region
      $region29: #{tpu_custom_call.1} parent=5 // pred_check
        %p223 = pneg %p222
      $region30: #{tpu_custom_call.1} parent=5 // pred_check_branch
        %225 = sbr.rel (%p223) target = $region32
      $region31: #{tpu_custom_call.1} parent=5 // pred_region
        // Predicated region
        $region33: #{tpu_custom_call.1} parent=31 // pred_check
          %p226 = pneg %p39
        $region34: #{tpu_custom_call.1} parent=31 // pred_check_branch
          %228 = sbr.rel (%p226) target = $region36
        $region35: #{tpu_custom_call.1} parent=31 // pred_region
          %s229 = sand.u32 %s29, 1
          %s230 = scalar_lea.sflag [#allocation3], %s229
          %s231 = sand.u32 %s29, 1
          %s232 = smul.addr %s231, 8
          %s233 = scalar_lea.vmem [#allocation2], %s232
          %s235 = ssub.s32 128, 128
          %236 = vsyncadd %s230, %s235
          %s237 = smul.addr %s19, 128
          %s238 = scalar_lea.hbm %s0, %s237
          %s240 = sshll.u32 %s233, 4
          %s241 = int_to_ptr.vmem [resolvable:$true] %s240
          %243 = dma.hbm_to_vmem [thread:$0]  %s238, 128, %s241, %s230
        $region36: #{tpu_custom_call.1} parent=31 // pred_fallthru
          _
      $region32: #{tpu_custom_call.1} parent=5 // pred_fallthru
        _
      %p244 = scmp.le.s32.totalorder 1, %s19
      %p245 = scmp.lt.s32.totalorder %s19, 3
      %p246 = pnand %p244, %p245
      %p247 = pneg %p246
      // Predicated region
      $region37: #{tpu_custom_call.1} parent=5 // pred_check
        _
      $region38: #{tpu_custom_call.1} parent=5 // pred_check_branch
        %249 = sbr.rel (%p246) target = $region40
      $region39: #{tpu_custom_call.1} parent=5 // pred_region
        %s250 = ssub.s32 %s19, 1
        %s251 = sand.u32 %s32, 1
        %s252 = scalar_lea.sflag [#allocation3], %s251
        %s253 = sand.u32 %s32, 1
        %s254 = smul.addr %s253, 8
        %s255 = scalar_lea.vmem [#allocation2], %s254
        // Predicated region
        $region41: #{tpu_custom_call.1} parent=39 // pred_check
          %p256 = pneg %p45
        $region42: #{tpu_custom_call.1} parent=39 // pred_check_branch
          %258 = sbr.rel (%p256) target = $region44
        $region43: #{tpu_custom_call.1} parent=39 // pred_region
          %259 = dma.done %s252, 128
        $region44: #{tpu_custom_call.1} parent=39 // pred_fallthru
          _
        // Predicated region
        $region45: #{tpu_custom_call.1} parent=39 // pred_check
          %p260 = pneg %p66
        $region46: #{tpu_custom_call.1} parent=39 // pred_check_branch
          %262 = sbr.rel (%p260) target = $region48
        $region47: #{tpu_custom_call.1} parent=39 // pred_region
          %263 = dma.done [#allocation6], 8192
        $region48: #{tpu_custom_call.1} parent=39 // pred_fallthru
          _
        // Predicated region
        $region49: #{tpu_custom_call.1} parent=39 // pred_check
          %p264 = pneg %p87
        $region50: #{tpu_custom_call.1} parent=39 // pred_check_branch
          %266 = sbr.rel (%p264) target = $region52
        $region51: #{tpu_custom_call.1} parent=39 // pred_region
          %267 = dma.done [#allocation6], 8192
        $region52: #{tpu_custom_call.1} parent=39 // pred_fallthru
          _
        // Predicated region
        $region53: #{tpu_custom_call.1} parent=39 // pred_check
          %p268 = pneg %p108
        $region54: #{tpu_custom_call.1} parent=39 // pred_check_branch
          %270 = sbr.rel (%p268) target = $region56
        $region55: #{tpu_custom_call.1} parent=39 // pred_region
          %271 = dma.done [#allocation9], 8192
        $region56: #{tpu_custom_call.1} parent=39 // pred_fallthru
          _
        // Predicated region
        $region57: #{tpu_custom_call.1} parent=39 // pred_check
          %p272 = pneg %p129
        $region58: #{tpu_custom_call.1} parent=39 // pred_check_branch
          %274 = sbr.rel (%p272) target = $region60
        $region59: #{tpu_custom_call.1} parent=39 // pred_region
          %275 = dma.done [#allocation9], 1024
        $region60: #{tpu_custom_call.1} parent=39 // pred_fallthru
          _
        %s276 = sand.u32 %s32, 1
        %s277 = scalar_lea.sflag [#allocation3], %s276
        %s278 = sand.u32 %s32, 1
        %s279 = smul.addr %s278, 8
        %s280 = scalar_lea.vmem [#allocation2], %s279
        %p281 = pneg %p45
        %p282 = pneg %p42
        %p283 = pneg %p66
        %p284 = pneg %p63
        %p285 = pneg %p87
        %p286 = pneg %p84
        %p287 = pneg %p108
        %p288 = pneg %p105
        %p289 = pneg %p129
        %p290 = pneg %p126
        %p291 = pneg %p155
        %p292 = pneg %p152
        %s293 = sand.u32 %s142, 1
        %s294 = scalar_lea.sflag [#allocation4], %s293
        %s295 = sand.u32 %s142, 1
        %s296 = smul.addr %s295, 8
        %s297 = scalar_lea.vmem [#allocation11], %s296
        %v298 = vld [vmem:[%s255] sm:$0xff]
        %v299 = vld [vmem:[#allocation5] sm:$0xff]
        %v300 = vld [vmem:[#allocation5 + $0x8] sm:$0xff]
        %v301 = vld [vmem:[#allocation5 + $0x10] sm:$0xff]
        %v302 = vld [vmem:[#allocation5 + $0x18] sm:$0xff]
        %v303 = vld [vmem:[#allocation5 + $0x20] sm:$0xff]
        %v304 = vld [vmem:[#allocation5 + $0x28] sm:$0xff]
        %v305 = vld [vmem:[#allocation5 + $0x30] sm:$0xff]
        %v306 = vld [vmem:[#allocation5 + $0x38] sm:$0xff]
        %v307 = vld [vmem:[#allocation5 + $0x40] sm:$0xff]
        %v308 = vld [vmem:[#allocation5 + $0x48] sm:$0xff]
        %v309 = vld [vmem:[#allocation5 + $0x50] sm:$0xff]
        %v310 = vld [vmem:[#allocation5 + $0x58] sm:$0xff]
        %v311 = vld [vmem:[#allocation5 + $0x60] sm:$0xff]
        %v312 = vld [vmem:[#allocation5 + $0x68] sm:$0xff]
        %v313 = vld [vmem:[#allocation5 + $0x70] sm:$0xff]
        %v314 = vld [vmem:[#allocation5 + $0x78] sm:$0xff]
        %v315 = vld [vmem:[#allocation7] sm:$0xff]
        %v316 = vld [vmem:[#allocation7 + $0x8] sm:$0xff]
        %v317 = vld [vmem:[#allocation7 + $0x10] sm:$0xff]
        %v318 = vld [vmem:[#allocation7 + $0x18] sm:$0xff]
        %v319 = vld [vmem:[#allocation7 + $0x20] sm:$0xff]
        %v320 = vld [vmem:[#allocation7 + $0x28] sm:$0xff]
        %v321 = vld [vmem:[#allocation7 + $0x30] sm:$0xff]
        %v322 = vld [vmem:[#allocation7 + $0x38] sm:$0xff]
        %v323 = vld [vmem:[#allocation7 + $0x40] sm:$0xff]
        %v324 = vld [vmem:[#allocation7 + $0x48] sm:$0xff]
        %v325 = vld [vmem:[#allocation7 + $0x50] sm:$0xff]
        %v326 = vld [vmem:[#allocation7 + $0x58] sm:$0xff]
        %v327 = vld [vmem:[#allocation7 + $0x60] sm:$0xff]
        %v328 = vld [vmem:[#allocation7 + $0x68] sm:$0xff]
        %v329 = vld [vmem:[#allocation7 + $0x70] sm:$0xff]
        %v330 = vld [vmem:[#allocation7 + $0x78] sm:$0xff]
        %v331 = vld [vmem:[#allocation8] sm:$0xff]
        %v332 = vld [vmem:[#allocation8 + $0x8] sm:$0xff]
        %v333 = vld [vmem:[#allocation8 + $0x10] sm:$0xff]
        %v334 = vld [vmem:[#allocation8 + $0x18] sm:$0xff]
        %v335 = vld [vmem:[#allocation8 + $0x20] sm:$0xff]
        %v336 = vld [vmem:[#allocation8 + $0x28] sm:$0xff]
        %v337 = vld [vmem:[#allocation8 + $0x30] sm:$0xff]
        %v338 = vld [vmem:[#allocation8 + $0x38] sm:$0xff]
        %v339 = vld [vmem:[#allocation8 + $0x40] sm:$0xff]
        %v340 = vld [vmem:[#allocation8 + $0x48] sm:$0xff]
        %v341 = vld [vmem:[#allocation8 + $0x50] sm:$0xff]
        %v342 = vld [vmem:[#allocation8 + $0x58] sm:$0xff]
        %v343 = vld [vmem:[#allocation8 + $0x60] sm:$0xff]
        %v344 = vld [vmem:[#allocation8 + $0x68] sm:$0xff]
        %v345 = vld [vmem:[#allocation8 + $0x70] sm:$0xff]
        %v346 = vld [vmem:[#allocation8 + $0x78] sm:$0xff]
        %v347 = vld [vmem:[#allocation10] sm:$0xff]
        %v348 = vld [vmem:[#allocation10 + $0x8] sm:$0xff]
        %349 = vmatprep.subr.mxu0 0.0
        %350 = vmatpush1.msra.mxu0 %v299
        %351 = vmatprep.subr.mxu0 0.0
        %352 = vmatpush1.msra.mxu0 %v300
        %353 = vmatprep.subr.mxu0 0.0
        %354 = vmatpush1.msra.mxu0 %v301
        %355 = vmatprep.subr.mxu0 0.0
        %356 = vmatpush1.msra.mxu0 %v302
        %357 = vmatprep.subr.mxu0 0.0
        %358 = vmatpush1.msra.mxu0 %v303
        %359 = vmatprep.subr.mxu0 0.0
        %360 = vmatpush1.msra.mxu0 %v304
        %361 = vmatprep.subr.mxu0 0.0
        %362 = vmatpush1.msra.mxu0 %v305
        %363 = vmatprep.subr.mxu0 0.0
        %364 = vmatpush1.msra.mxu0 %v306
        %365 = vmatprep.subr.mxu0 0.0
        %366 = vmatpush1.msra.mxu0 %v307
        %367 = vmatprep.subr.mxu0 0.0
        %368 = vmatpush1.msra.mxu0 %v308
        %369 = vmatprep.subr.mxu0 0.0
        %370 = vmatpush1.msra.mxu0 %v309
        %371 = vmatprep.subr.mxu0 0.0
        %372 = vmatpush1.msra.mxu0 %v310
        %373 = vmatprep.subr.mxu0 0.0
        %374 = vmatpush1.msra.mxu0 %v311
        %375 = vmatprep.subr.mxu0 0.0
        %376 = vmatpush1.msra.mxu0 %v312
        %377 = vmatprep.subr.mxu0 0.0
        %378 = vmatpush1.msra.mxu0 %v313
        %379 = vmatprep.subr.mxu0 0.0
        %380 = vmatpush1.msra.mxu0 %v314
        %381 = vmatprep.subr.mxu0 0.0
        %382 = vmatpush1.msra.mxu0 0.0
        %383 = vmatprep.subr.mxu0 0.0
        %384 = vmatpush1.msra.mxu0 0.0
        %385 = vmatprep.subr.mxu0 0.0
        %386 = vmatpush1.msra.mxu0 0.0
        %387 = vmatprep.subr.mxu0 0.0
        %388 = vmatpush1.msra.mxu0 0.0
        %389 = vmatprep.subr.mxu0 0.0
        %390 = vmatpush1.msra.mxu0 0.0
        %391 = vmatprep.subr.mxu0 0.0
        %392 = vmatpush1.msra.mxu0 0.0
        %393 = vmatprep.subr.mxu0 0.0
        %394 = vmatpush1.msra.mxu0 0.0
        %395 = vmatprep.subr.mxu0 0.0
        %396 = vmatpush1.msra.mxu0 0.0
        %397 = vmatprep.subr.mxu0 0.0
        %398 = vmatpush1.msra.mxu0 0.0
        %399 = vmatprep.subr.mxu0 0.0
        %400 = vmatpush1.msra.mxu0 0.0
        %401 = vmatprep.subr.mxu0 0.0
        %402 = vmatpush1.msra.mxu0 0.0
        %403 = vmatprep.subr.mxu0 0.0
        %404 = vmatpush1.msra.mxu0 0.0
        %405 = vmatprep.subr.mxu0 0.0
        %406 = vmatpush1.msra.mxu0 0.0
        %407 = vmatprep.subr.mxu0 0.0
        %408 = vmatpush1.msra.mxu0 0.0
        %409 = vmatprep.subr.mxu0 0.0
        %410 = vmatpush1.msra.mxu0 0.0
        %411 = vmatprep.subr.mxu0 0.0
        %412 = vmatpush1.msra.mxu0 0.0
        %413 = vmatprep.mubr.f32.mxu0 0.0
        %414 = vmatmul.mubr.f32.gmra.mrb[0].mxu0 %v298
        %v415 = vpop.f32.mrb[0].mxu0
        %v416 = vadd.f32 0.0, %v415
        %v417 = vpop.f32.mrb[0].mxu0
        %418 = vdwg.mxu0
        %419 = vmatprep.subr.mxu0 0.0
        %420 = vmatpush1.msra.mxu0 %v315
        %421 = vmatprep.subr.mxu0 0.0
        %422 = vmatpush1.msra.mxu0 %v316
        %423 = vmatprep.subr.mxu0 0.0
        %424 = vmatpush1.msra.mxu0 %v317
        %425 = vmatprep.subr.mxu0 0.0
        %426 = vmatpush1.msra.mxu0 %v318
        %427 = vmatprep.subr.mxu0 0.0
        %428 = vmatpush1.msra.mxu0 %v319
        %429 = vmatprep.subr.mxu0 0.0
        %430 = vmatpush1.msra.mxu0 %v320
        %431 = vmatprep.subr.mxu0 0.0
        %432 = vmatpush1.msra.mxu0 %v321
        %433 = vmatprep.subr.mxu0 0.0
        %434 = vmatpush1.msra.mxu0 %v322
        %435 = vmatprep.subr.mxu0 0.0
        %436 = vmatpush1.msra.mxu0 %v323
        %437 = vmatprep.subr.mxu0 0.0
        %438 = vmatpush1.msra.mxu0 %v324
        %439 = vmatprep.subr.mxu0 0.0
        %440 = vmatpush1.msra.mxu0 %v325
        %441 = vmatprep.subr.mxu0 0.0
        %442 = vmatpush1.msra.mxu0 %v326
        %443 = vmatprep.subr.mxu0 0.0
        %444 = vmatpush1.msra.mxu0 %v327
        %445 = vmatprep.subr.mxu0 0.0
        %446 = vmatpush1.msra.mxu0 %v328
        %447 = vmatprep.subr.mxu0 0.0
        %448 = vmatpush1.msra.mxu0 %v329
        %449 = vmatprep.subr.mxu0 0.0
        %450 = vmatpush1.msra.mxu0 %v330
        %451 = vmatprep.subr.mxu0 0.0
        %452 = vmatpush1.msra.mxu0 0.0
        %453 = vmatprep.subr.mxu0 0.0
        %454 = vmatpush1.msra.mxu0 0.0
        %455 = vmatprep.subr.mxu0 0.0
        %456 = vmatpush1.msra.mxu0 0.0
        %457 = vmatprep.subr.mxu0 0.0
        %458 = vmatpush1.msra.mxu0 0.0
        %459 = vmatprep.subr.mxu0 0.0
        %460 = vmatpush1.msra.mxu0 0.0
        %461 = vmatprep.subr.mxu0 0.0
        %462 = vmatpush1.msra.mxu0 0.0
        %463 = vmatprep.subr.mxu0 0.0
        %464 = vmatpush1.msra.mxu0 0.0
        %465 = vmatprep.subr.mxu0 0.0
        %466 = vmatpush1.msra.mxu0 0.0
        %467 = vmatprep.subr.mxu0 0.0
        %468 = vmatpush1.msra.mxu0 0.0
        %469 = vmatprep.subr.mxu0 0.0
        %470 = vmatpush1.msra.mxu0 0.0
        %471 = vmatprep.subr.mxu0 0.0
        %472 = vmatpush1.msra.mxu0 0.0
        %473 = vmatprep.subr.mxu0 0.0
        %474 = vmatpush1.msra.mxu0 0.0
        %475 = vmatprep.subr.mxu0 0.0
        %476 = vmatpush1.msra.mxu0 0.0
        %477 = vmatprep.subr.mxu0 0.0
        %478 = vmatpush1.msra.mxu0 0.0
        %479 = vmatprep.subr.mxu0 0.0
        %480 = vmatpush1.msra.mxu0 0.0
        %481 = vmatprep.subr.mxu0 0.0
        %482 = vmatpush1.msra.mxu0 0.0
        %483 = vmatprep.mubr.f32.mxu0 0.0
        %484 = vmatmul.mubr.f32.gmra.mrb[0].mxu0 %v298
        %v485 = vpop.f32.mrb[0].mxu0
        %v486 = vadd.f32 0.0, %v485
        %v487 = vpop.f32.mrb[0].mxu0
        %488 = vdwg.mxu0
        %489 = vmatprep.subr.mxu0 0.0
        %490 = vmatpush1.msra.mxu0 %v331
        %491 = vmatprep.subr.mxu0 0.0
        %492 = vmatpush1.msra.mxu0 %v332
        %493 = vmatprep.subr.mxu0 0.0
        %494 = vmatpush1.msra.mxu0 %v333
        %495 = vmatprep.subr.mxu0 0.0
        %496 = vmatpush1.msra.mxu0 %v334
        %497 = vmatprep.subr.mxu0 0.0
        %498 = vmatpush1.msra.mxu0 %v335
        %499 = vmatprep.subr.mxu0 0.0
        %500 = vmatpush1.msra.mxu0 %v336
        %501 = vmatprep.subr.mxu0 0.0
        %502 = vmatpush1.msra.mxu0 %v337
        %503 = vmatprep.subr.mxu0 0.0
        %504 = vmatpush1.msra.mxu0 %v338
        %505 = vmatprep.subr.mxu0 0.0
        %506 = vmatpush1.msra.mxu0 %v339
        %507 = vmatprep.subr.mxu0 0.0
        %508 = vmatpush1.msra.mxu0 %v340
        %509 = vmatprep.subr.mxu0 0.0
        %510 = vmatpush1.msra.mxu0 %v341
        %511 = vmatprep.subr.mxu0 0.0
        %512 = vmatpush1.msra.mxu0 %v342
        %513 = vmatprep.subr.mxu0 0.0
        %514 = vmatpush1.msra.mxu0 %v343
        %515 = vmatprep.subr.mxu0 0.0
        %516 = vmatpush1.msra.mxu0 %v344
        %517 = vmatprep.subr.mxu0 0.0
        %518 = vmatpush1.msra.mxu0 %v345
        %519 = vmatprep.subr.mxu0 0.0
        %520 = vmatpush1.msra.mxu0 %v346
        %521 = vmatprep.subr.mxu0 0.0
        %522 = vmatpush1.msra.mxu0 0.0
        %523 = vmatprep.subr.mxu0 0.0
        %524 = vmatpush1.msra.mxu0 0.0
        %525 = vmatprep.subr.mxu0 0.0
        %526 = vmatpush1.msra.mxu0 0.0
        %527 = vmatprep.subr.mxu0 0.0
        %528 = vmatpush1.msra.mxu0 0.0
        %529 = vmatprep.subr.mxu0 0.0
        %530 = vmatpush1.msra.mxu0 0.0
        %531 = vmatprep.subr.mxu0 0.0
        %532 = vmatpush1.msra.mxu0 0.0
        %533 = vmatprep.subr.mxu0 0.0
        %534 = vmatpush1.msra.mxu0 0.0
        %535 = vmatprep.subr.mxu0 0.0
        %536 = vmatpush1.msra.mxu0 0.0
        %537 = vmatprep.subr.mxu0 0.0
        %538 = vmatpush1.msra.mxu0 0.0
        %539 = vmatprep.subr.mxu0 0.0
        %540 = vmatpush1.msra.mxu0 0.0
        %541 = vmatprep.subr.mxu0 0.0
        %542 = vmatpush1.msra.mxu0 0.0
        %543 = vmatprep.subr.mxu0 0.0
        %544 = vmatpush1.msra.mxu0 0.0
        %545 = vmatprep.subr.mxu0 0.0
        %546 = vmatpush1.msra.mxu0 0.0
        %547 = vmatprep.subr.mxu0 0.0
        %548 = vmatpush1.msra.mxu0 0.0
        %549 = vmatprep.subr.mxu0 0.0
        %550 = vmatpush1.msra.mxu0 0.0
        %551 = vmatprep.subr.mxu0 0.0
        %552 = vmatpush1.msra.mxu0 0.0
        %553 = vmatprep.mubr.f32.mxu0 0.0
        %554 = vmatmul.mubr.f32.gmra.mrb[0].mxu0 %v298
        %v555 = vpop.f32.mrb[0].mxu0
        %v556 = vadd.f32 0.0, %v555
        %v557 = vpop.f32.mrb[0].mxu0
        %558 = vdwg.mxu0
        %vm559 = vcmask 130048
        %v561 = vsel %vm559, %v416, 0
        %v564 = vsel %vm559, %v486, 0
        %566 = vmatprep.subr.mxu0 0.0
        %567 = vmatpush1.xpose.msra.mxu0 %v564
        %568 = vmatprep.subr.mxu0 0.0
        %569 = vmatpush1.xpose.msra.mxu0 0.0
        %570 = vmatprep.subr.mxu0 0.0
        %571 = vmatpush1.xpose.msra.mxu0 0.0
        %572 = vmatprep.subr.mxu0 0.0
        %573 = vmatpush1.xpose.msra.mxu0 0.0
        %574 = vmatprep.subr.mxu0 0.0
        %575 = vmatpush1.xpose.msra.mxu0 0.0
        %576 = vmatprep.subr.mxu0 0.0
        %577 = vmatpush1.xpose.msra.mxu0 0.0
        %578 = vmatprep.subr.mxu0 0.0
        %579 = vmatpush1.xpose.msra.mxu0 0.0
        %580 = vmatprep.subr.mxu0 0.0
        %581 = vmatpush1.xpose.msra.mxu0 0.0
        %582 = vmatprep.subr.mxu0 0.0
        %583 = vmatpush1.xpose.msra.mxu0 0.0
        %584 = vmatprep.subr.mxu0 0.0
        %585 = vmatpush1.xpose.msra.mxu0 0.0
        %586 = vmatprep.subr.mxu0 0.0
        %587 = vmatpush1.xpose.msra.mxu0 0.0
        %588 = vmatprep.subr.mxu0 0.0
        %589 = vmatpush1.xpose.msra.mxu0 0.0
        %590 = vmatprep.subr.mxu0 0.0
        %591 = vmatpush1.xpose.msra.mxu0 0.0
        %592 = vmatprep.subr.mxu0 0.0
        %593 = vmatpush1.xpose.msra.mxu0 0.0
        %594 = vmatprep.subr.mxu0 0.0
        %595 = vmatpush1.xpose.msra.mxu0 0.0
        %596 = vmatprep.subr.mxu0 0.0
        %597 = vmatpush1.xpose.msra.mxu0 0.0
        %598 = vmatprep.subr.mxu0 0.0
        %599 = vmatpush1.xpose.msra.mxu0 0.0
        %600 = vmatprep.subr.mxu0 0.0
        %601 = vmatpush1.xpose.msra.mxu0 0.0
        %602 = vmatprep.subr.mxu0 0.0
        %603 = vmatpush1.xpose.msra.mxu0 0.0
        %604 = vmatprep.subr.mxu0 0.0
        %605 = vmatpush1.xpose.msra.mxu0 0.0
        %606 = vmatprep.subr.mxu0 0.0
        %607 = vmatpush1.xpose.msra.mxu0 0.0
        %608 = vmatprep.subr.mxu0 0.0
        %609 = vmatpush1.xpose.msra.mxu0 0.0
        %610 = vmatprep.subr.mxu0 0.0
        %611 = vmatpush1.xpose.msra.mxu0 0.0
        %612 = vmatprep.subr.mxu0 0.0
        %613 = vmatpush1.xpose.msra.mxu0 0.0
        %614 = vmatprep.subr.mxu0 0.0
        %615 = vmatpush1.xpose.msra.mxu0 0.0
        %616 = vmatprep.subr.mxu0 0.0
        %617 = vmatpush1.xpose.msra.mxu0 0.0
        %618 = vmatprep.subr.mxu0 0.0
        %619 = vmatpush1.xpose.msra.mxu0 0.0
        %620 = vmatprep.subr.mxu0 0.0
        %621 = vmatpush1.xpose.msra.mxu0 0.0
        %622 = vmatprep.subr.mxu0 0.0
        %623 = vmatpush1.xpose.msra.mxu0 0.0
        %624 = vmatprep.subr.mxu0 0.0
        %625 = vmatpush1.xpose.msra.mxu0 0.0
        %626 = vmatprep.subr.mxu0 0.0
        %627 = vmatpush1.xpose.msra.mxu0 0.0
        %628 = vmatprep.subr.mxu0 0.0
        %629 = vmatpush1.xpose.msra.mxu0 0.0
        %630 = vmatprep.mubr.f32.mxu0 0.0
        %631 = vmatmul.mubr.f32.gmra.mrb[0].mxu0 %v561
        %v632 = vpop.f32.mrb[0].mxu0
        %v633 = vadd.f32 0.0, %v632
        %v634 = vpop.f32.mrb[0].mxu0
        %635 = vdwg.mxu0
        %vm636 = vcmask 64512
        %v637 = vsel %vm636, %v633, -inf
        %638 = vmax.xlane.f32.xlu0 %v637
        %v639 = vpop.xlane.xlu0 %638
        %v640 = vsub.f32 %v633, %v639
        %v641 = vmul.f32 %v640, 1.442695
        %v642 = vpow.pop %v641
        %v643 = vsel %vm636, %v642, 0.0
        %644 = vadd.xlane.f32.xlu0 %v643
        %v645 = vpop.xlane.xlu0 %644
        %v646 = vrcp.pop %v645
        %v647 = vmul.f32 %v645, %v646
        %v648 = vsub.f32 2.0, %v647
        %v649 = vmul.f32 %v646, %v648
        %v650 = vmul.f32 %v642, %v649
        %v652 = vsel %vm636, %v650, 0
        %654 = vmatprep.subr.mxu0 0.0
        %655 = vmatpush1.msra.mxu0 %v556
        %656 = vmatprep.subr.mxu0 0.0
        %657 = vmatpush1.msra.mxu0 0.0
        %658 = vmatprep.subr.mxu0 0.0
        %659 = vmatpush1.msra.mxu0 0.0
        %660 = vmatprep.subr.mxu0 0.0
        %661 = vmatpush1.msra.mxu0 0.0
        %662 = vmatprep.subr.mxu0 0.0
        %663 = vmatpush1.msra.mxu0 0.0
        %664 = vmatprep.subr.mxu0 0.0
        %665 = vmatpush1.msra.mxu0 0.0
        %666 = vmatprep.subr.mxu0 0.0
        %667 = vmatpush1.msra.mxu0 0.0
        %668 = vmatprep.subr.mxu0 0.0
        %669 = vmatpush1.msra.mxu0 0.0
        %670 = vmatprep.subr.mxu0 0.0
        %671 = vmatpush1.msra.mxu0 0.0
        %672 = vmatprep.subr.mxu0 0.0
        %673 = vmatpush1.msra.mxu0 0.0
        %674 = vmatprep.subr.mxu0 0.0
        %675 = vmatpush1.msra.mxu0 0.0
        %676 = vmatprep.subr.mxu0 0.0
        %677 = vmatpush1.msra.mxu0 0.0
        %678 = vmatprep.subr.mxu0 0.0
        %679 = vmatpush1.msra.mxu0 0.0
        %680 = vmatprep.subr.mxu0 0.0
        %681 = vmatpush1.msra.mxu0 0.0
        %682 = vmatprep.subr.mxu0 0.0
        %683 = vmatpush1.msra.mxu0 0.0
        %684 = vmatprep.subr.mxu0 0.0
        %685 = vmatpush1.msra.mxu0 0.0
        %686 = vmatprep.subr.mxu0 0.0
        %687 = vmatpush1.msra.mxu0 0.0
        %688 = vmatprep.subr.mxu0 0.0
        %689 = vmatpush1.msra.mxu0 0.0
        %690 = vmatprep.subr.mxu0 0.0
        %691 = vmatpush1.msra.mxu0 0.0
        %692 = vmatprep.subr.mxu0 0.0
        %693 = vmatpush1.msra.mxu0 0.0
        %694 = vmatprep.subr.mxu0 0.0
        %695 = vmatpush1.msra.mxu0 0.0
        %696 = vmatprep.subr.mxu0 0.0
        %697 = vmatpush1.msra.mxu0 0.0
        %698 = vmatprep.subr.mxu0 0.0
        %699 = vmatpush1.msra.mxu0 0.0
        %700 = vmatprep.subr.mxu0 0.0
        %701 = vmatpush1.msra.mxu0 0.0
        %702 = vmatprep.subr.mxu0 0.0
        %703 = vmatpush1.msra.mxu0 0.0
        %704 = vmatprep.subr.mxu0 0.0
        %705 = vmatpush1.msra.mxu0 0.0
        %706 = vmatprep.subr.mxu0 0.0
        %707 = vmatpush1.msra.mxu0 0.0
        %708 = vmatprep.subr.mxu0 0.0
        %709 = vmatpush1.msra.mxu0 0.0
        %710 = vmatprep.subr.mxu0 0.0
        %711 = vmatpush1.msra.mxu0 0.0
        %712 = vmatprep.subr.mxu0 0.0
        %713 = vmatpush1.msra.mxu0 0.0
        %714 = vmatprep.subr.mxu0 0.0
        %715 = vmatpush1.msra.mxu0 0.0
        %716 = vmatprep.subr.mxu0 0.0
        %717 = vmatpush1.msra.mxu0 0.0
        %718 = vmatprep.mubr.f32.mxu0 0.0
        %719 = vmatmul.mubr.f32.gmra.mrb[0].mxu0 %v652
        %v720 = vpop.f32.mrb[0].mxu0
        %v721 = vadd.f32 0.0, %v720
        %v722 = vpop.f32.mrb[0].mxu0
        %723 = vdwg.mxu0
        %s724 = scalar_lea.vmem [#allocation5], 128
        %v725 = vld [vmem:[%s724] sm:$0xff]
        %v726 = vld [vmem:[%s724 + $0x8] sm:$0xff]
        %v727 = vld [vmem:[%s724 + $0x10] sm:$0xff]
        %v728 = vld [vmem:[%s724 + $0x18] sm:$0xff]
        %v729 = vld [vmem:[%s724 + $0x20] sm:$0xff]
        %v730 = vld [vmem:[%s724 + $0x28] sm:$0xff]
        %v731 = vld [vmem:[%s724 + $0x30] sm:$0xff]
        %v732 = vld [vmem:[%s724 + $0x38] sm:$0xff]
        %v733 = vld [vmem:[%s724 + $0x40] sm:$0xff]
        %v734 = vld [vmem:[%s724 + $0x48] sm:$0xff]
        %v735 = vld [vmem:[%s724 + $0x50] sm:$0xff]
        %v736 = vld [vmem:[%s724 + $0x58] sm:$0xff]
        %v737 = vld [vmem:[%s724 + $0x60] sm:$0xff]
        %v738 = vld [vmem:[%s724 + $0x68] sm:$0xff]
        %v739 = vld [vmem:[%s724 + $0x70] sm:$0xff]
        %v740 = vld [vmem:[%s724 + $0x78] sm:$0xff]
        %s741 = scalar_lea.vmem [#allocation7], 128
        %v742 = vld [vmem:[%s741] sm:$0xff]
        %v743 = vld [vmem:[%s741 + $0x8] sm:$0xff]
        %v744 = vld [vmem:[%s741 + $0x10] sm:$0xff]
        %v745 = vld [vmem:[%s741 + $0x18] sm:$0xff]
        %v746 = vld [vmem:[%s741 + $0x20] sm:$0xff]
        %v747 = vld [vmem:[%s741 + $0x28] sm:$0xff]
        %v748 = vld [vmem:[%s741 + $0x30] sm:$0xff]
        %v749 = vld [vmem:[%s741 + $0x38] sm:$0xff]
        %v750 = vld [vmem:[%s741 + $0x40] sm:$0xff]
        %v751 = vld [vmem:[%s741 + $0x48] sm:$0xff]
        %v752 = vld [vmem:[%s741 + $0x50] sm:$0xff]
        %v753 = vld [vmem:[%s741 + $0x58] sm:$0xff]
        %v754 = vld [vmem:[%s741 + $0x60] sm:$0xff]
        %v755 = vld [vmem:[%s741 + $0x68] sm:$0xff]
        %v756 = vld [vmem:[%s741 + $0x70] sm:$0xff]
        %v757 = vld [vmem:[%s741 + $0x78] sm:$0xff]
        %s758 = scalar_lea.vmem [#allocation8], 128
        %v759 = vld [vmem:[%s758] sm:$0xff]
        %v760 = vld [vmem:[%s758 + $0x8] sm:$0xff]
        %v761 = vld [vmem:[%s758 + $0x10] sm:$0xff]
        %v762 = vld [vmem:[%s758 + $0x18] sm:$0xff]
        %v763 = vld [vmem:[%s758 + $0x20] sm:$0xff]
        %v764 = vld [vmem:[%s758 + $0x28] sm:$0xff]
        %v765 = vld [vmem:[%s758 + $0x30] sm:$0xff]
        %v766 = vld [vmem:[%s758 + $0x38] sm:$0xff]
        %v767 = vld [vmem:[%s758 + $0x40] sm:$0xff]
        %v768 = vld [vmem:[%s758 + $0x48] sm:$0xff]
        %v769 = vld [vmem:[%s758 + $0x50] sm:$0xff]
        %v770 = vld [vmem:[%s758 + $0x58] sm:$0xff]
        %v771 = vld [vmem:[%s758 + $0x60] sm:$0xff]
        %v772 = vld [vmem:[%s758 + $0x68] sm:$0xff]
        %v773 = vld [vmem:[%s758 + $0x70] sm:$0xff]
        %v774 = vld [vmem:[%s758 + $0x78] sm:$0xff]
        %s775 = scalar_lea.vmem [#allocation10], 16
        %v776 = vld [vmem:[%s775] sm:$0xff]
        %v777 = vld [vmem:[%s775 + $0x8] sm:$0xff]
        %778 = vmatprep.subr.mxu0 0.0
        %779 = vmatpush1.msra.mxu0 %v725
        %780 = vmatprep.subr.mxu0 0.0
        %781 = vmatpush1.msra.mxu0 %v726
        %782 = vmatprep.subr.mxu0 0.0
        %783 = vmatpush1.msra.mxu0 %v727
        %784 = vmatprep.subr.mxu0 0.0
        %785 = vmatpush1.msra.mxu0 %v728
        %786 = vmatprep.subr.mxu0 0.0
        %787 = vmatpush1.msra.mxu0 %v729
        %788 = vmatprep.subr.mxu0 0.0
        %789 = vmatpush1.msra.mxu0 %v730
        %790 = vmatprep.subr.mxu0 0.0
        %791 = vmatpush1.msra.mxu0 %v731
        %792 = vmatprep.subr.mxu0 0.0
        %793 = vmatpush1.msra.mxu0 %v732
        %794 = vmatprep.subr.mxu0 0.0
        %795 = vmatpush1.msra.mxu0 %v733
        %796 = vmatprep.subr.mxu0 0.0
        %797 = vmatpush1.msra.mxu0 %v734
        %798 = vmatprep.subr.mxu0 0.0
        %799 = vmatpush1.msra.mxu0 %v735
        %800 = vmatprep.subr.mxu0 0.0
        %801 = vmatpush1.msra.mxu0 %v736
        %802 = vmatprep.subr.mxu0 0.0
        %803 = vmatpush1.msra.mxu0 %v737
        %804 = vmatprep.subr.mxu0 0.0
        %805 = vmatpush1.msra.mxu0 %v738
        %806 = vmatprep.subr.mxu0 0.0
        %807 = vmatpush1.msra.mxu0 %v739
        %808 = vmatprep.subr.mxu0 0.0
        %809 = vmatpush1.msra.mxu0 %v740
        %810 = vmatprep.subr.mxu0 0.0
        %811 = vmatpush1.msra.mxu0 0.0
        %812 = vmatprep.subr.mxu0 0.0
        %813 = vmatpush1.msra.mxu0 0.0
        %814 = vmatprep.subr.mxu0 0.0
        %815 = vmatpush1.msra.mxu0 0.0
        %816 = vmatprep.subr.mxu0 0.0
        %817 = vmatpush1.msra.mxu0 0.0
        %818 = vmatprep.subr.mxu0 0.0
        %819 = vmatpush1.msra.mxu0 0.0
        %820 = vmatprep.subr.mxu0 0.0
        %821 = vmatpush1.msra.mxu0 0.0
        %822 = vmatprep.subr.mxu0 0.0
        %823 = vmatpush1.msra.mxu0 0.0
        %824 = vmatprep.subr.mxu0 0.0
        %825 = vmatpush1.msra.mxu0 0.0
        %826 = vmatprep.subr.mxu0 0.0
        %827 = vmatpush1.msra.mxu0 0.0
        %828 = vmatprep.subr.mxu0 0.0
        %829 = vmatpush1.msra.mxu0 0.0
        %830 = vmatprep.subr.mxu0 0.0
        %831 = vmatpush1.msra.mxu0 0.0
        %832 = vmatprep.subr.mxu0 0.0
        %833 = vmatpush1.msra.mxu0 0.0
        %834 = vmatprep.subr.mxu0 0.0
        %835 = vmatpush1.msra.mxu0 0.0
        %836 = vmatprep.subr.mxu0 0.0
        %837 = vmatpush1.msra.mxu0 0.0
        %838 = vmatprep.subr.mxu0 0.0
        %839 = vmatpush1.msra.mxu0 0.0
        %840 = vmatprep.subr.mxu0 0.0
        %841 = vmatpush1.msra.mxu0 0.0
        %842 = vmatprep.mubr.f32.mxu0 0.0
        %843 = vmatmul.mubr.f32.gmra.mrb[0].mxu0 %v298
        %v844 = vpop.f32.mrb[0].mxu0
        %v845 = vadd.f32 0.0, %v844
        %v846 = vpop.f32.mrb[0].mxu0
        %847 = vdwg.mxu0
        %848 = vmatprep.subr.mxu0 0.0
        %849 = vmatpush1.msra.mxu0 %v742
        %850 = vmatprep.subr.mxu0 0.0
        %851 = vmatpush1.msra.mxu0 %v743
        %852 = vmatprep.subr.mxu0 0.0
        %853 = vmatpush1.msra.mxu0 %v744
        %854 = vmatprep.subr.mxu0 0.0
        %855 = vmatpush1.msra.mxu0 %v745
        %856 = vmatprep.subr.mxu0 0.0
        %857 = vmatpush1.msra.mxu0 %v746
        %858 = vmatprep.subr.mxu0 0.0
        %859 = vmatpush1.msra.mxu0 %v747
        %860 = vmatprep.subr.mxu0 0.0
        %861 = vmatpush1.msra.mxu0 %v748
        %862 = vmatprep.subr.mxu0 0.0
        %863 = vmatpush1.msra.mxu0 %v749
        %864 = vmatprep.subr.mxu0 0.0
        %865 = vmatpush1.msra.mxu0 %v750
        %866 = vmatprep.subr.mxu0 0.0
        %867 = vmatpush1.msra.mxu0 %v751
        %868 = vmatprep.subr.mxu0 0.0
        %869 = vmatpush1.msra.mxu0 %v752
        %870 = vmatprep.subr.mxu0 0.0
        %871 = vmatpush1.msra.mxu0 %v753
        %872 = vmatprep.subr.mxu0 0.0
        %873 = vmatpush1.msra.mxu0 %v754
        %874 = vmatprep.subr.mxu0 0.0
        %875 = vmatpush1.msra.mxu0 %v755
        %876 = vmatprep.subr.mxu0 0.0
        %877 = vmatpush1.msra.mxu0 %v756
        %878 = vmatprep.subr.mxu0 0.0
        %879 = vmatpush1.msra.mxu0 %v757
        %880 = vmatprep.subr.mxu0 0.0
        %881 = vmatpush1.msra.mxu0 0.0
        %882 = vmatprep.subr.mxu0 0.0
        %883 = vmatpush1.msra.mxu0 0.0
        %884 = vmatprep.subr.mxu0 0.0
        %885 = vmatpush1.msra.mxu0 0.0
        %886 = vmatprep.subr.mxu0 0.0
        %887 = vmatpush1.msra.mxu0 0.0
        %888 = vmatprep.subr.mxu0 0.0
        %889 = vmatpush1.msra.mxu0 0.0
        %890 = vmatprep.subr.mxu0 0.0
        %891 = vmatpush1.msra.mxu0 0.0
        %892 = vmatprep.subr.mxu0 0.0
        %893 = vmatpush1.msra.mxu0 0.0
        %894 = vmatprep.subr.mxu0 0.0
        %895 = vmatpush1.msra.mxu0 0.0
        %896 = vmatprep.subr.mxu0 0.0
        %897 = vmatpush1.msra.mxu0 0.0
        %898 = vmatprep.subr.mxu0 0.0
        %899 = vmatpush1.msra.mxu0 0.0
        %900 = vmatprep.subr.mxu0 0.0
        %901 = vmatpush1.msra.mxu0 0.0
        %902 = vmatprep.subr.mxu0 0.0
        %903 = vmatpush1.msra.mxu0 0.0
        %904 = vmatprep.subr.mxu0 0.0
        %905 = vmatpush1.msra.mxu0 0.0
        %906 = vmatprep.subr.mxu0 0.0
        %907 = vmatpush1.msra.mxu0 0.0
        %908 = vmatprep.subr.mxu0 0.0
        %909 = vmatpush1.msra.mxu0 0.0
        %910 = vmatprep.subr.mxu0 0.0
        %911 = vmatpush1.msra.mxu0 0.0
        %912 = vmatprep.mubr.f32.mxu0 0.0
        %913 = vmatmul.mubr.f32.gmra.mrb[0].mxu0 %v298
        %v914 = vpop.f32.mrb[0].mxu0
        %v915 = vadd.f32 0.0, %v914
        %v916 = vpop.f32.mrb[0].mxu0
        %917 = vdwg.mxu0
        %918 = vmatprep.subr.mxu0 0.0
        %919 = vmatpush1.msra.mxu0 %v759
        %920 = vmatprep.subr.mxu0 0.0
        %921 = vmatpush1.msra.mxu0 %v760
        %922 = vmatprep.subr.mxu0 0.0
        %923 = vmatpush1.msra.mxu0 %v761
        %924 = vmatprep.subr.mxu0 0.0
        %925 = vmatpush1.msra.mxu0 %v762
        %926 = vmatprep.subr.mxu0 0.0
        %927 = vmatpush1.msra.mxu0 %v763
        %928 = vmatprep.subr.mxu0 0.0
        %929 = vmatpush1.msra.mxu0 %v764
        %930 = vmatprep.subr.mxu0 0.0
        %931 = vmatpush1.msra.mxu0 %v765
        %932 = vmatprep.subr.mxu0 0.0
        %933 = vmatpush1.msra.mxu0 %v766
        %934 = vmatprep.subr.mxu0 0.0
        %935 = vmatpush1.msra.mxu0 %v767
        %936 = vmatprep.subr.mxu0 0.0
        %937 = vmatpush1.msra.mxu0 %v768
        %938 = vmatprep.subr.mxu0 0.0
        %939 = vmatpush1.msra.mxu0 %v769
        %940 = vmatprep.subr.mxu0 0.0
        %941 = vmatpush1.msra.mxu0 %v770
        %942 = vmatprep.subr.mxu0 0.0
        %943 = vmatpush1.msra.mxu0 %v771
        %944 = vmatprep.subr.mxu0 0.0
        %945 = vmatpush1.msra.mxu0 %v772
        %946 = vmatprep.subr.mxu0 0.0
        %947 = vmatpush1.msra.mxu0 %v773
        %948 = vmatprep.subr.mxu0 0.0
        %949 = vmatpush1.msra.mxu0 %v774
        %950 = vmatprep.subr.mxu0 0.0
        %951 = vmatpush1.msra.mxu0 0.0
        %952 = vmatprep.subr.mxu0 0.0
        %953 = vmatpush1.msra.mxu0 0.0
        %954 = vmatprep.subr.mxu0 0.0
        %955 = vmatpush1.msra.mxu0 0.0
        %956 = vmatprep.subr.mxu0 0.0
        %957 = vmatpush1.msra.mxu0 0.0
        %958 = vmatprep.subr.mxu0 0.0
        %959 = vmatpush1.msra.mxu0 0.0
        %960 = vmatprep.subr.mxu0 0.0
        %961 = vmatpush1.msra.mxu0 0.0
        %962 = vmatprep.subr.mxu0 0.0
        %963 = vmatpush1.msra.mxu0 0.0
        %964 = vmatprep.subr.mxu0 0.0
        %965 = vmatpush1.msra.mxu0 0.0
        %966 = vmatprep.subr.mxu0 0.0
        %967 = vmatpush1.msra.mxu0 0.0
        %968 = vmatprep.subr.mxu0 0.0
        %969 = vmatpush1.msra.mxu0 0.0
        %970 = vmatprep.subr.mxu0 0.0
        %971 = vmatpush1.msra.mxu0 0.0
        %972 = vmatprep.subr.mxu0 0.0
        %973 = vmatpush1.msra.mxu0 0.0
        %974 = vmatprep.subr.mxu0 0.0
        %975 = vmatpush1.msra.mxu0 0.0
        %976 = vmatprep.subr.mxu0 0.0
        %977 = vmatpush1.msra.mxu0 0.0
        %978 = vmatprep.subr.mxu0 0.0
        %979 = vmatpush1.msra.mxu0 0.0
        %980 = vmatprep.subr.mxu0 0.0
        %981 = vmatpush1.msra.mxu0 0.0
        %982 = vmatprep.mubr.f32.mxu0 0.0
        %983 = vmatmul.mubr.f32.gmra.mrb[0].mxu0 %v298
        %v984 = vpop.f32.mrb[0].mxu0
        %v985 = vadd.f32 0.0, %v984
        %v986 = vpop.f32.mrb[0].mxu0
        %987 = vdwg.mxu0
        %v989 = vsel %vm559, %v845, 0
        %v992 = vsel %vm559, %v915, 0
        %994 = vmatprep.subr.mxu0 0.0
        %995 = vmatpush1.xpose.msra.mxu0 %v992
        %996 = vmatprep.subr.mxu0 0.0
        %997 = vmatpush1.xpose.msra.mxu0 0.0
        %998 = vmatprep.subr.mxu0 0.0
        %999 = vmatpush1.xpose.msra.mxu0 0.0
        %1000 = vmatprep.subr.mxu0 0.0
        %1001 = vmatpush1.xpose.msra.mxu0 0.0
        %1002 = vmatprep.subr.mxu0 0.0
        %1003 = vmatpush1.xpose.msra.mxu0 0.0
        %1004 = vmatprep.subr.mxu0 0.0
        %1005 = vmatpush1.xpose.msra.mxu0 0.0
        %1006 = vmatprep.subr.mxu0 0.0
        %1007 = vmatpush1.xpose.msra.mxu0 0.0
        %1008 = vmatprep.subr.mxu0 0.0
        %1009 = vmatpush1.xpose.msra.mxu0 0.0
        %1010 = vmatprep.subr.mxu0 0.0
        %1011 = vmatpush1.xpose.msra.mxu0 0.0
        %1012 = vmatprep.subr.mxu0 0.0
        %1013 = vmatpush1.xpose.msra.mxu0 0.0
        %1014 = vmatprep.subr.mxu0 0.0
        %1015 = vmatpush1.xpose.msra.mxu0 0.0
        %1016 = vmatprep.subr.mxu0 0.0
        %1017 = vmatpush1.xpose.msra.mxu0 0.0
        %1018 = vmatprep.subr.mxu0 0.0
        %1019 = vmatpush1.xpose.msra.mxu0 0.0
        %1020 = vmatprep.subr.mxu0 0.0
        %1021 = vmatpush1.xpose.msra.mxu0 0.0
        %1022 = vmatprep.subr.mxu0 0.0
        %1023 = vmatpush1.xpose.msra.mxu0 0.0
        %1024 = vmatprep.subr.mxu0 0.0
        %1025 = vmatpush1.xpose.msra.mxu0 0.0
        %1026 = vmatprep.subr.mxu0 0.0
        %1027 = vmatpush1.xpose.msra.mxu0 0.0
        %1028 = vmatprep.subr.mxu0 0.0
        %1029 = vmatpush1.xpose.msra.mxu0 0.0
        %1030 = vmatprep.subr.mxu0 0.0
        %1031 = vmatpush1.xpose.msra.mxu0 0.0
        %1032 = vmatprep.subr.mxu0 0.0
        %1033 = vmatpush1.xpose.msra.mxu0 0.0
        %1034 = vmatprep.subr.mxu0 0.0
        %1035 = vmatpush1.xpose.msra.mxu0 0.0
        %1036 = vmatprep.subr.mxu0 0.0
        %1037 = vmatpush1.xpose.msra.mxu0 0.0
        %1038 = vmatprep.subr.mxu0 0.0
        %1039 = vmatpush1.xpose.msra.mxu0 0.0
        %1040 = vmatprep.subr.mxu0 0.0
        %1041 = vmatpush1.xpose.msra.mxu0 0.0
        %1042 = vmatprep.subr.mxu0 0.0
        %1043 = vmatpush1.xpose.msra.mxu0 0.0
        %1044 = vmatprep.subr.mxu0 0.0
        %1045 = vmatpush1.xpose.msra.mxu0 0.0
        %1046 = vmatprep.subr.mxu0 0.0
        %1047 = vmatpush1.xpose.msra.mxu0 0.0
        %1048 = vmatprep.subr.mxu0 0.0
        %1049 = vmatpush1.xpose.msra.mxu0 0.0
        %1050 = vmatprep.subr.mxu0 0.0
        %1051 = vmatpush1.xpose.msra.mxu0 0.0
        %1052 = vmatprep.subr.mxu0 0.0
        %1053 = vmatpush1.xpose.msra.mxu0 0.0
        %1054 = vmatprep.subr.mxu0 0.0
        %1055 = vmatpush1.xpose.msra.mxu0 0.0
        %1056 = vmatprep.subr.mxu0 0.0
        %1057 = vmatpush1.xpose.msra.mxu0 0.0
        %1058 = vmatprep.mubr.f32.mxu0 0.0
        %1059 = vmatmul.mubr.f32.gmra.mrb[0].mxu0 %v989
        %v1060 = vpop.f32.mrb[0].mxu0
        %v1061 = vadd.f32 0.0, %v1060
        %v1062 = vpop.f32.mrb[0].mxu0
        %1063 = vdwg.mxu0
        %v1064 = vsel %vm636, %v1061, -inf
        %1065 = vmax.xlane.f32.xlu0 %v1064
        %v1066 = vpop.xlane.xlu0 %1065
        %v1067 = vsub.f32 %v1061, %v1066
        %v1068 = vmul.f32 %v1067, 1.442695
        %v1069 = vpow.pop %v1068
        %v1070 = vsel %vm636, %v1069, 0.0
        %1071 = vadd.xlane.f32.xlu0 %v1070
        %v1072 = vpop.xlane.xlu0 %1071
        %v1073 = vrcp.pop %v1072
        %v1074 = vmul.f32 %v1072, %v1073
        %v1075 = vsub.f32 2.0, %v1074
        %v1076 = vmul.f32 %v1073, %v1075
        %v1077 = vmul.f32 %v1069, %v1076
        %v1079 = vsel %vm636, %v1077, 0
        %1081 = vmatprep.subr.mxu0 0.0
        %1082 = vmatpush1.msra.mxu0 %v985
        %1083 = vmatprep.subr.mxu0 0.0
        %1084 = vmatpush1.msra.mxu0 0.0
        %1085 = vmatprep.subr.mxu0 0.0
        %1086 = vmatpush1.msra.mxu0 0.0
        %1087 = vmatprep.subr.mxu0 0.0
        %1088 = vmatpush1.msra.mxu0 0.0
        %1089 = vmatprep.subr.mxu0 0.0
        %1090 = vmatpush1.msra.mxu0 0.0
        %1091 = vmatprep.subr.mxu0 0.0
        %1092 = vmatpush1.msra.mxu0 0.0
        %1093 = vmatprep.subr.mxu0 0.0
        %1094 = vmatpush1.msra.mxu0 0.0
        %1095 = vmatprep.subr.mxu0 0.0
        %1096 = vmatpush1.msra.mxu0 0.0
        %1097 = vmatprep.subr.mxu0 0.0
        %1098 = vmatpush1.msra.mxu0 0.0
        %1099 = vmatprep.subr.mxu0 0.0
        %1100 = vmatpush1.msra.mxu0 0.0
        %1101 = vmatprep.subr.mxu0 0.0
        %1102 = vmatpush1.msra.mxu0 0.0
        %1103 = vmatprep.subr.mxu0 0.0
        %1104 = vmatpush1.msra.mxu0 0.0
        %1105 = vmatprep.subr.mxu0 0.0
        %1106 = vmatpush1.msra.mxu0 0.0
        %1107 = vmatprep.subr.mxu0 0.0
        %1108 = vmatpush1.msra.mxu0 0.0
        %1109 = vmatprep.subr.mxu0 0.0
        %1110 = vmatpush1.msra.mxu0 0.0
        %1111 = vmatprep.subr.mxu0 0.0
        %1112 = vmatpush1.msra.mxu0 0.0
        %1113 = vmatprep.subr.mxu0 0.0
        %1114 = vmatpush1.msra.mxu0 0.0
        %1115 = vmatprep.subr.mxu0 0.0
        %1116 = vmatpush1.msra.mxu0 0.0
        %1117 = vmatprep.subr.mxu0 0.0
        %1118 = vmatpush1.msra.mxu0 0.0
        %1119 = vmatprep.subr.mxu0 0.0
        %1120 = vmatpush1.msra.mxu0 0.0
        %1121 = vmatprep.subr.mxu0 0.0
        %1122 = vmatpush1.msra.mxu0 0.0
        %1123 = vmatprep.subr.mxu0 0.0
        %1124 = vmatpush1.msra.mxu0 0.0
        %1125 = vmatprep.subr.mxu0 0.0
        %1126 = vmatpush1.msra.mxu0 0.0
        %1127 = vmatprep.subr.mxu0 0.0
        %1128 = vmatpush1.msra.mxu0 0.0
        %1129 = vmatprep.subr.mxu0 0.0
        %1130 = vmatpush1.msra.mxu0 0.0
        %1131 = vmatprep.subr.mxu0 0.0
        %1132 = vmatpush1.msra.mxu0 0.0
        %1133 = vmatprep.subr.mxu0 0.0
        %1134 = vmatpush1.msra.mxu0 0.0
        %1135 = vmatprep.subr.mxu0 0.0
        %1136 = vmatpush1.msra.mxu0 0.0
        %1137 = vmatprep.subr.mxu0 0.0
        %1138 = vmatpush1.msra.mxu0 0.0
        %1139 = vmatprep.subr.mxu0 0.0
        %1140 = vmatpush1.msra.mxu0 0.0
        %1141 = vmatprep.subr.mxu0 0.0
        %1142 = vmatpush1.msra.mxu0 0.0
        %1143 = vmatprep.subr.mxu0 0.0
        %1144 = vmatpush1.msra.mxu0 0.0
        %1145 = vmatprep.mubr.f32.mxu0 0.0
        %1146 = vmatmul.mubr.f32.gmra.mrb[0].mxu0 %v1079
        %v1147 = vpop.f32.mrb[0].mxu0
        %v1148 = vadd.f32 0.0, %v1147
        %v1149 = vpop.f32.mrb[0].mxu0
        %1150 = vdwg.mxu0
        %v1152 = vsel %vm559, %v1148, 0
        %1154 = vmatprep.subr.mxu0 0.0
        %1155 = vmatpush1.msra.mxu0 %v776
        %1156 = vmatprep.subr.mxu0 0.0
        %1157 = vmatpush1.msra.mxu0 %v777
        %1158 = vmatprep.subr.mxu0 0.0
        %1159 = vmatpush1.msra.mxu0 0.0
        %1160 = vmatprep.subr.mxu0 0.0
        %1161 = vmatpush1.msra.mxu0 0.0
        %1162 = vmatprep.subr.mxu0 0.0
        %1163 = vmatpush1.msra.mxu0 0.0
        %1164 = vmatprep.subr.mxu0 0.0
        %1165 = vmatpush1.msra.mxu0 0.0
        %1166 = vmatprep.subr.mxu0 0.0
        %1167 = vmatpush1.msra.mxu0 0.0
        %1168 = vmatprep.subr.mxu0 0.0
        %1169 = vmatpush1.msra.mxu0 0.0
        %1170 = vmatprep.subr.mxu0 0.0
        %1171 = vmatpush1.msra.mxu0 0.0
        %1172 = vmatprep.subr.mxu0 0.0
        %1173 = vmatpush1.msra.mxu0 0.0
        %1174 = vmatprep.subr.mxu0 0.0
        %1175 = vmatpush1.msra.mxu0 0.0
        %1176 = vmatprep.subr.mxu0 0.0
        %1177 = vmatpush1.msra.mxu0 0.0
        %1178 = vmatprep.subr.mxu0 0.0
        %1179 = vmatpush1.msra.mxu0 0.0
        %1180 = vmatprep.subr.mxu0 0.0
        %1181 = vmatpush1.msra.mxu0 0.0
        %1182 = vmatprep.subr.mxu0 0.0
        %1183 = vmatpush1.msra.mxu0 0.0
        %1184 = vmatprep.subr.mxu0 0.0
        %1185 = vmatpush1.msra.mxu0 0.0
        %1186 = vmatprep.subr.mxu0 0.0
        %1187 = vmatpush1.msra.mxu0 0.0
        %1188 = vmatprep.subr.mxu0 0.0
        %1189 = vmatpush1.msra.mxu0 0.0
        %1190 = vmatprep.subr.mxu0 0.0
        %1191 = vmatpush1.msra.mxu0 0.0
        %1192 = vmatprep.subr.mxu0 0.0
        %1193 = vmatpush1.msra.mxu0 0.0
        %1194 = vmatprep.subr.mxu0 0.0
        %1195 = vmatpush1.msra.mxu0 0.0
        %1196 = vmatprep.subr.mxu0 0.0
        %1197 = vmatpush1.msra.mxu0 0.0
        %1198 = vmatprep.subr.mxu0 0.0
        %1199 = vmatpush1.msra.mxu0 0.0
        %1200 = vmatprep.subr.mxu0 0.0
        %1201 = vmatpush1.msra.mxu0 0.0
        %1202 = vmatprep.subr.mxu0 0.0
        %1203 = vmatpush1.msra.mxu0 0.0
        %1204 = vmatprep.subr.mxu0 0.0
        %1205 = vmatpush1.msra.mxu0 0.0
        %1206 = vmatprep.subr.mxu0 0.0
        %1207 = vmatpush1.msra.mxu0 0.0
        %1208 = vmatprep.subr.mxu0 0.0
        %1209 = vmatpush1.msra.mxu0 0.0
        %1210 = vmatprep.subr.mxu0 0.0
        %1211 = vmatpush1.msra.mxu0 0.0
        %1212 = vmatprep.subr.mxu0 0.0
        %1213 = vmatpush1.msra.mxu0 0.0
        %1214 = vmatprep.subr.mxu0 0.0
        %1215 = vmatpush1.msra.mxu0 0.0
        %1216 = vmatprep.subr.mxu0 0.0
        %1217 = vmatpush1.msra.mxu0 0.0
        %1218 = vmatprep.mubr.f32.mxu0 0.0
        %1219 = vmatmul.mubr.f32.gmra.mrb[0].mxu0 %v1152
        %v1220 = vpop.f32.mrb[0].mxu0
        %v1221 = vadd.f32 0.0, %v1220
        %v1222 = vpop.f32.mrb[0].mxu0
        %1223 = vdwg.mxu0
        %v1225 = vsel %vm559, %v721, 0
        %1227 = vmatprep.subr.mxu0 0.0
        %1228 = vmatpush1.msra.mxu0 %v347
        %1229 = vmatprep.subr.mxu0 0.0
        %1230 = vmatpush1.msra.mxu0 %v348
        %1231 = vmatprep.subr.mxu0 0.0
        %1232 = vmatpush1.msra.mxu0 0.0
        %1233 = vmatprep.subr.mxu0 0.0
        %1234 = vmatpush1.msra.mxu0 0.0
        %1235 = vmatprep.subr.mxu0 0.0
        %1236 = vmatpush1.msra.mxu0 0.0
        %1237 = vmatprep.subr.mxu0 0.0
        %1238 = vmatpush1.msra.mxu0 0.0
        %1239 = vmatprep.subr.mxu0 0.0
        %1240 = vmatpush1.msra.mxu0 0.0
        %1241 = vmatprep.subr.mxu0 0.0
        %1242 = vmatpush1.msra.mxu0 0.0
        %1243 = vmatprep.subr.mxu0 0.0
        %1244 = vmatpush1.msra.mxu0 0.0
        %1245 = vmatprep.subr.mxu0 0.0
        %1246 = vmatpush1.msra.mxu0 0.0
        %1247 = vmatprep.subr.mxu0 0.0
        %1248 = vmatpush1.msra.mxu0 0.0
        %1249 = vmatprep.subr.mxu0 0.0
        %1250 = vmatpush1.msra.mxu0 0.0
        %1251 = vmatprep.subr.mxu0 0.0
        %1252 = vmatpush1.msra.mxu0 0.0
        %1253 = vmatprep.subr.mxu0 0.0
        %1254 = vmatpush1.msra.mxu0 0.0
        %1255 = vmatprep.subr.mxu0 0.0
        %1256 = vmatpush1.msra.mxu0 0.0
        %1257 = vmatprep.subr.mxu0 0.0
        %1258 = vmatpush1.msra.mxu0 0.0
        %1259 = vmatprep.subr.mxu0 0.0
        %1260 = vmatpush1.msra.mxu0 0.0
        %1261 = vmatprep.subr.mxu0 0.0
        %1262 = vmatpush1.msra.mxu0 0.0
        %1263 = vmatprep.subr.mxu0 0.0
        %1264 = vmatpush1.msra.mxu0 0.0
        %1265 = vmatprep.subr.mxu0 0.0
        %1266 = vmatpush1.msra.mxu0 0.0
        %1267 = vmatprep.subr.mxu0 0.0
        %1268 = vmatpush1.msra.mxu0 0.0
        %1269 = vmatprep.subr.mxu0 0.0
        %1270 = vmatpush1.msra.mxu0 0.0
        %1271 = vmatprep.subr.mxu0 0.0
        %1272 = vmatpush1.msra.mxu0 0.0
        %1273 = vmatprep.subr.mxu0 0.0
        %1274 = vmatpush1.msra.mxu0 0.0
        %1275 = vmatprep.subr.mxu0 0.0
        %1276 = vmatpush1.msra.mxu0 0.0
        %1277 = vmatprep.subr.mxu0 0.0
        %1278 = vmatpush1.msra.mxu0 0.0
        %1279 = vmatprep.subr.mxu0 0.0
        %1280 = vmatpush1.msra.mxu0 0.0
        %1281 = vmatprep.subr.mxu0 0.0
        %1282 = vmatpush1.msra.mxu0 0.0
        %1283 = vmatprep.subr.mxu0 0.0
        %1284 = vmatpush1.msra.mxu0 0.0
        %1285 = vmatprep.subr.mxu0 0.0
        %1286 = vmatpush1.msra.mxu0 0.0
        %1287 = vmatprep.subr.mxu0 0.0
        %1288 = vmatpush1.msra.mxu0 0.0
        %1289 = vmatprep.subr.mxu0 0.0
        %1290 = vmatpush1.msra.mxu0 0.0
        %1291 = vmatprep.mubr.f32.mxu0 0.0
        %1292 = vmatmul.mubr.f32.gmra.mrb[0].mxu0 %v1225
        %v1293 = vpop.f32.mrb[0].mxu0
        %v1294 = vadd.f32 %v1221, %v1293
        %v1295 = vpop.f32.mrb[0].mxu0
        %1296 = vdwg.mxu0
        %s1297 = scalar_lea.vmem [#allocation5], 256
        %v1298 = vld [vmem:[%s1297] sm:$0xff]
        %v1299 = vld [vmem:[%s1297 + $0x8] sm:$0xff]
        %v1300 = vld [vmem:[%s1297 + $0x10] sm:$0xff]
        %v1301 = vld [vmem:[%s1297 + $0x18] sm:$0xff]
        %v1302 = vld [vmem:[%s1297 + $0x20] sm:$0xff]
        %v1303 = vld [vmem:[%s1297 + $0x28] sm:$0xff]
        %v1304 = vld [vmem:[%s1297 + $0x30] sm:$0xff]
        %v1305 = vld [vmem:[%s1297 + $0x38] sm:$0xff]
        %v1306 = vld [vmem:[%s1297 + $0x40] sm:$0xff]
        %v1307 = vld [vmem:[%s1297 + $0x48] sm:$0xff]
        %v1308 = vld [vmem:[%s1297 + $0x50] sm:$0xff]
        %v1309 = vld [vmem:[%s1297 + $0x58] sm:$0xff]
        %v1310 = vld [vmem:[%s1297 + $0x60] sm:$0xff]
        %v1311 = vld [vmem:[%s1297 + $0x68] sm:$0xff]
        %v1312 = vld [vmem:[%s1297 + $0x70] sm:$0xff]
        %v1313 = vld [vmem:[%s1297 + $0x78] sm:$0xff]
        %s1314 = scalar_lea.vmem [#allocation7], 256
        %v1315 = vld [vmem:[%s1314] sm:$0xff]
        %v1316 = vld [vmem:[%s1314 + $0x8] sm:$0xff]
        %v1317 = vld [vmem:[%s1314 + $0x10] sm:$0xff]
        %v1318 = vld [vmem:[%s1314 + $0x18] sm:$0xff]
        %v1319 = vld [vmem:[%s1314 + $0x20] sm:$0xff]
        %v1320 = vld [vmem:[%s1314 + $0x28] sm:$0xff]
        %v1321 = vld [vmem:[%s1314 + $0x30] sm:$0xff]
        %v1322 = vld [vmem:[%s1314 + $0x38] sm:$0xff]
        %v1323 = vld [vmem:[%s1314 + $0x40] sm:$0xff]
        %v1324 = vld [vmem:[%s1314 + $0x48] sm:$0xff]
        %v1325 = vld [vmem:[%s1314 + $0x50] sm:$0xff]
        %v1326 = vld [vmem:[%s1314 + $0x58] sm:$0xff]
        %v1327 = vld [vmem:[%s1314 + $0x60] sm:$0xff]
        %v1328 = vld [vmem:[%s1314 + $0x68] sm:$0xff]
        %v1329 = vld [vmem:[%s1314 + $0x70] sm:$0xff]
        %v1330 = vld [vmem:[%s1314 + $0x78] sm:$0xff]
        %s1331 = scalar_lea.vmem [#allocation8], 256
        %v1332 = vld [vmem:[%s1331] sm:$0xff]
        %v1333 = vld [vmem:[%s1331 + $0x8] sm:$0xff]
        %v1334 = vld [vmem:[%s1331 + $0x10] sm:$0xff]
        %v1335 = vld [vmem:[%s1331 + $0x18] sm:$0xff]
        %v1336 = vld [vmem:[%s1331 + $0x20] sm:$0xff]
        %v1337 = vld [vmem:[%s1331 + $0x28] sm:$0xff]
        %v1338 = vld [vmem:[%s1331 + $0x30] sm:$0xff]
        %v1339 = vld [vmem:[%s1331 + $0x38] sm:$0xff]
        %v1340 = vld [vmem:[%s1331 + $0x40] sm:$0xff]
        %v1341 = vld [vmem:[%s1331 + $0x48] sm:$0xff]
        %v1342 = vld [vmem:[%s1331 + $0x50] sm:$0xff]
        %v1343 = vld [vmem:[%s1331 + $0x58] sm:$0xff]
        %v1344 = vld [vmem:[%s1331 + $0x60] sm:$0xff]
        %v1345 = vld [vmem:[%s1331 + $0x68] sm:$0xff]
        %v1346 = vld [vmem:[%s1331 + $0x70] sm:$0xff]
        %v1347 = vld [vmem:[%s1331 + $0x78] sm:$0xff]
        %s1348 = scalar_lea.vmem [#allocation10], 32
        %v1349 = vld [vmem:[%s1348] sm:$0xff]
        %v1350 = vld [vmem:[%s1348 + $0x8] sm:$0xff]
        %1351 = vmatprep.subr.mxu0 0.0
        %1352 = vmatpush1.msra.mxu0 %v1298
        %1353 = vmatprep.subr.mxu0 0.0
        %1354 = vmatpush1.msra.mxu0 %v1299
        %1355 = vmatprep.subr.mxu0 0.0
        %1356 = vmatpush1.msra.mxu0 %v1300
        %1357 = vmatprep.subr.mxu0 0.0
        %1358 = vmatpush1.msra.mxu0 %v1301
        %1359 = vmatprep.subr.mxu0 0.0
        %1360 = vmatpush1.msra.mxu0 %v1302
        %1361 = vmatprep.subr.mxu0 0.0
        %1362 = vmatpush1.msra.mxu0 %v1303
        %1363 = vmatprep.subr.mxu0 0.0
        %1364 = vmatpush1.msra.mxu0 %v1304
        %1365 = vmatprep.subr.mxu0 0.0
        %1366 = vmatpush1.msra.mxu0 %v1305
        %1367 = vmatprep.subr.mxu0 0.0
        %1368 = vmatpush1.msra.mxu0 %v1306
        %1369 = vmatprep.subr.mxu0 0.0
        %1370 = vmatpush1.msra.mxu0 %v1307
        %1371 = vmatprep.subr.mxu0 0.0
        %1372 = vmatpush1.msra.mxu0 %v1308
        %1373 = vmatprep.subr.mxu0 0.0
        %1374 = vmatpush1.msra.mxu0 %v1309
        %1375 = vmatprep.subr.mxu0 0.0
        %1376 = vmatpush1.msra.mxu0 %v1310
        %1377 = vmatprep.subr.mxu0 0.0
        %1378 = vmatpush1.msra.mxu0 %v1311
        %1379 = vmatprep.subr.mxu0 0.0
        %1380 = vmatpush1.msra.mxu0 %v1312
        %1381 = vmatprep.subr.mxu0 0.0
        %1382 = vmatpush1.msra.mxu0 %v1313
        %1383 = vmatprep.subr.mxu0 0.0
        %1384 = vmatpush1.msra.mxu0 0.0
        %1385 = vmatprep.subr.mxu0 0.0
        %1386 = vmatpush1.msra.mxu0 0.0
        %1387 = vmatprep.subr.mxu0 0.0
        %1388 = vmatpush1.msra.mxu0 0.0
        %1389 = vmatprep.subr.mxu0 0.0
        %1390 = vmatpush1.msra.mxu0 0.0
        %1391 = vmatprep.subr.mxu0 0.0
        %1392 = vmatpush1.msra.mxu0 0.0
        %1393 = vmatprep.subr.mxu0 0.0
        %1394 = vmatpush1.msra.mxu0 0.0
        %1395 = vmatprep.subr.mxu0 0.0
        %1396 = vmatpush1.msra.mxu0 0.0
        %1397 = vmatprep.subr.mxu0 0.0
        %1398 = vmatpush1.msra.mxu0 0.0
        %1399 = vmatprep.subr.mxu0 0.0
        %1400 = vmatpush1.msra.mxu0 0.0
        %1401 = vmatprep.subr.mxu0 0.0
        %1402 = vmatpush1.msra.mxu0 0.0
        %1403 = vmatprep.subr.mxu0 0.0
        %1404 = vmatpush1.msra.mxu0 0.0
        %1405 = vmatprep.subr.mxu0 0.0
        %1406 = vmatpush1.msra.mxu0 0.0
        %1407 = vmatprep.subr.mxu0 0.0
        %1408 = vmatpush1.msra.mxu0 0.0
        %1409 = vmatprep.subr.mxu0 0.0
        %1410 = vmatpush1.msra.mxu0 0.0
        %1411 = vmatprep.subr.mxu0 0.0
        %1412 = vmatpush1.msra.mxu0 0.0
        %1413 = vmatprep.subr.mxu0 0.0
        %1414 = vmatpush1.msra.mxu0 0.0
        %1415 = vmatprep.mubr.f32.mxu0 0.0
        %1416 = vmatmul.mubr.f32.gmra.mrb[0].mxu0 %v298
        %v1417 = vpop.f32.mrb[0].mxu0
        %v1418 = vadd.f32 0.0, %v1417
        %v1419 = vpop.f32.mrb[0].mxu0
        %1420 = vdwg.mxu0
        %1421 = vmatprep.subr.mxu0 0.0
        %1422 = vmatpush1.msra.mxu0 %v1315
        %1423 = vmatprep.subr.mxu0 0.0
        %1424 = vmatpush1.msra.mxu0 %v1316
        %1425 = vmatprep.subr.mxu0 0.0
        %1426 = vmatpush1.msra.mxu0 %v1317
        %1427 = vmatprep.subr.mxu0 0.0
        %1428 = vmatpush1.msra.mxu0 %v1318
        %1429 = vmatprep.subr.mxu0 0.0
        %1430 = vmatpush1.msra.mxu0 %v1319
        %1431 = vmatprep.subr.mxu0 0.0
        %1432 = vmatpush1.msra.mxu0 %v1320
        %1433 = vmatprep.subr.mxu0 0.0
        %1434 = vmatpush1.msra.mxu0 %v1321
        %1435 = vmatprep.subr.mxu0 0.0
        %1436 = vmatpush1.msra.mxu0 %v1322
        %1437 = vmatprep.subr.mxu0 0.0
        %1438 = vmatpush1.msra.mxu0 %v1323
        %1439 = vmatprep.subr.mxu0 0.0
        %1440 = vmatpush1.msra.mxu0 %v1324
        %1441 = vmatprep.subr.mxu0 0.0
        %1442 = vmatpush1.msra.mxu0 %v1325
        %1443 = vmatprep.subr.mxu0 0.0
        %1444 = vmatpush1.msra.mxu0 %v1326
        %1445 = vmatprep.subr.mxu0 0.0
        %1446 = vmatpush1.msra.mxu0 %v1327
        %1447 = vmatprep.subr.mxu0 0.0
        %1448 = vmatpush1.msra.mxu0 %v1328
        %1449 = vmatprep.subr.mxu0 0.0
        %1450 = vmatpush1.msra.mxu0 %v1329
        %1451 = vmatprep.subr.mxu0 0.0
        %1452 = vmatpush1.msra.mxu0 %v1330
        %1453 = vmatprep.subr.mxu0 0.0
        %1454 = vmatpush1.msra.mxu0 0.0
        %1455 = vmatprep.subr.mxu0 0.0
        %1456 = vmatpush1.msra.mxu0 0.0
        %1457 = vmatprep.subr.mxu0 0.0
        %1458 = vmatpush1.msra.mxu0 0.0
        %1459 = vmatprep.subr.mxu0 0.0
        %1460 = vmatpush1.msra.mxu0 0.0
        %1461 = vmatprep.subr.mxu0 0.0
        %1462 = vmatpush1.msra.mxu0 0.0
        %1463 = vmatprep.subr.mxu0 0.0
        %1464 = vmatpush1.msra.mxu0 0.0
        %1465 = vmatprep.subr.mxu0 0.0
        %1466 = vmatpush1.msra.mxu0 0.0
        %1467 = vmatprep.subr.mxu0 0.0
        %1468 = vmatpush1.msra.mxu0 0.0
        %1469 = vmatprep.subr.mxu0 0.0
        %1470 = vmatpush1.msra.mxu0 0.0
        %1471 = vmatprep.subr.mxu0 0.0
        %1472 = vmatpush1.msra.mxu0 0.0
        %1473 = vmatprep.subr.mxu0 0.0
        %1474 = vmatpush1.msra.mxu0 0.0
        %1475 = vmatprep.subr.mxu0 0.0
        %1476 = vmatpush1.msra.mxu0 0.0
        %1477 = vmatprep.subr.mxu0 0.0
        %1478 = vmatpush1.msra.mxu0 0.0
        %1479 = vmatprep.subr.mxu0 0.0
        %1480 = vmatpush1.msra.mxu0 0.0
        %1481 = vmatprep.subr.mxu0 0.0
        %1482 = vmatpush1.msra.mxu0 0.0
        %1483 = vmatprep.subr.mxu0 0.0
        %1484 = vmatpush1.msra.mxu0 0.0
        %1485 = vmatprep.mubr.f32.mxu0 0.0
        %1486 = vmatmul.mubr.f32.gmra.mrb[0].mxu0 %v298
        %v1487 = vpop.f32.mrb[0].mxu0
        %v1488 = vadd.f32 0.0, %v1487
        %v1489 = vpop.f32.mrb[0].mxu0
        %1490 = vdwg.mxu0
        %1491 = vmatprep.subr.mxu0 0.0
        %1492 = vmatpush1.msra.mxu0 %v1332
        %1493 = vmatprep.subr.mxu0 0.0
        %1494 = vmatpush1.msra.mxu0 %v1333
        %1495 = vmatprep.subr.mxu0 0.0
        %1496 = vmatpush1.msra.mxu0 %v1334
        %1497 = vmatprep.subr.mxu0 0.0
        %1498 = vmatpush1.msra.mxu0 %v1335
        %1499 = vmatprep.subr.mxu0 0.0
        %1500 = vmatpush1.msra.mxu0 %v1336
        %1501 = vmatprep.subr.mxu0 0.0
        %1502 = vmatpush1.msra.mxu0 %v1337
        %1503 = vmatprep.subr.mxu0 0.0
        %1504 = vmatpush1.msra.mxu0 %v1338
        %1505 = vmatprep.subr.mxu0 0.0
        %1506 = vmatpush1.msra.mxu0 %v1339
        %1507 = vmatprep.subr.mxu0 0.0
        %1508 = vmatpush1.msra.mxu0 %v1340
        %1509 = vmatprep.subr.mxu0 0.0
        %1510 = vmatpush1.msra.mxu0 %v1341
        %1511 = vmatprep.subr.mxu0 0.0
        %1512 = vmatpush1.msra.mxu0 %v1342
        %1513 = vmatprep.subr.mxu0 0.0
        %1514 = vmatpush1.msra.mxu0 %v1343
        %1515 = vmatprep.subr.mxu0 0.0
        %1516 = vmatpush1.msra.mxu0 %v1344
        %1517 = vmatprep.subr.mxu0 0.0
        %1518 = vmatpush1.msra.mxu0 %v1345
        %1519 = vmatprep.subr.mxu0 0.0
        %1520 = vmatpush1.msra.mxu0 %v1346
        %1521 = vmatprep.subr.mxu0 0.0
        %1522 = vmatpush1.msra.mxu0 %v1347
        %1523 = vmatprep.subr.mxu0 0.0
        %1524 = vmatpush1.msra.mxu0 0.0
        %1525 = vmatprep.subr.mxu0 0.0
        %1526 = vmatpush1.msra.mxu0 0.0
        %1527 = vmatprep.subr.mxu0 0.0
        %1528 = vmatpush1.msra.mxu0 0.0
        %1529 = vmatprep.subr.mxu0 0.0
        %1530 = vmatpush1.msra.mxu0 0.0
        %1531 = vmatprep.subr.mxu0 0.0
        %1532 = vmatpush1.msra.mxu0 0.0
        %1533 = vmatprep.subr.mxu0 0.0
        %1534 = vmatpush1.msra.mxu0 0.0
        %1535 = vmatprep.subr.mxu0 0.0
        %1536 = vmatpush1.msra.mxu0 0.0
        %1537 = vmatprep.subr.mxu0 0.0
        %1538 = vmatpush1.msra.mxu0 0.0
        %1539 = vmatprep.subr.mxu0 0.0
        %1540 = vmatpush1.msra.mxu0 0.0
        %1541 = vmatprep.subr.mxu0 0.0
        %1542 = vmatpush1.msra.mxu0 0.0
        %1543 = vmatprep.subr.mxu0 0.0
        %1544 = vmatpush1.msra.mxu0 0.0
        %1545 = vmatprep.subr.mxu0 0.0
        %1546 = vmatpush1.msra.mxu0 0.0
        %1547 = vmatprep.subr.mxu0 0.0
        %1548 = vmatpush1.msra.mxu0 0.0
        %1549 = vmatprep.subr.mxu0 0.0
        %1550 = vmatpush1.msra.mxu0 0.0
        %1551 = vmatprep.subr.mxu0 0.0
        %1552 = vmatpush1.msra.mxu0 0.0
        %1553 = vmatprep.subr.mxu0 0.0
        %1554 = vmatpush1.msra.mxu0 0.0
        %1555 = vmatprep.mubr.f32.mxu0 0.0
        %1556 = vmatmul.mubr.f32.gmra.mrb[0].mxu0 %v298
        %v1557 = vpop.f32.mrb[0].mxu0
        %v1558 = vadd.f32 0.0, %v1557
        %v1559 = vpop.f32.mrb[0].mxu0
        %1560 = vdwg.mxu0
        %v1562 = vsel %vm559, %v1418, 0
        %v1565 = vsel %vm559, %v1488, 0
        %1567 = vmatprep.subr.mxu0 0.0
        %1568 = vmatpush1.xpose.msra.mxu0 %v1565
        %1569 = vmatprep.subr.mxu0 0.0
        %1570 = vmatpush1.xpose.msra.mxu0 0.0
        %1571 = vmatprep.subr.mxu0 0.0
        %1572 = vmatpush1.xpose.msra.mxu0 0.0
        %1573 = vmatprep.subr.mxu0 0.0
        %1574 = vmatpush1.xpose.msra.mxu0 0.0
        %1575 = vmatprep.subr.mxu0 0.0
        %1576 = vmatpush1.xpose.msra.mxu0 0.0
        %1577 = vmatprep.subr.mxu0 0.0
        %1578 = vmatpush1.xpose.msra.mxu0 0.0
        %1579 = vmatprep.subr.mxu0 0.0
        %1580 = vmatpush1.xpose.msra.mxu0 0.0
        %1581 = vmatprep.subr.mxu0 0.0
        %1582 = vmatpush1.xpose.msra.mxu0 0.0
        %1583 = vmatprep.subr.mxu0 0.0
        %1584 = vmatpush1.xpose.msra.mxu0 0.0
        %1585 = vmatprep.subr.mxu0 0.0
        %1586 = vmatpush1.xpose.msra.mxu0 0.0
        %1587 = vmatprep.subr.mxu0 0.0
        %1588 = vmatpush1.xpose.msra.mxu0 0.0
        %1589 = vmatprep.subr.mxu0 0.0
        %1590 = vmatpush1.xpose.msra.mxu0 0.0
        %1591 = vmatprep.subr.mxu0 0.0
        %1592 = vmatpush1.xpose.msra.mxu0 0.0
        %1593 = vmatprep.subr.mxu0 0.0
        %1594 = vmatpush1.xpose.msra.mxu0 0.0
        %1595 = vmatprep.subr.mxu0 0.0
        %1596 = vmatpush1.xpose.msra.mxu0 0.0
        %1597 = vmatprep.subr.mxu0 0.0
        %1598 = vmatpush1.xpose.msra.mxu0 0.0
        %1599 = vmatprep.subr.mxu0 0.0
        %1600 = vmatpush1.xpose.msra.mxu0 0.0
        %1601 = vmatprep.subr.mxu0 0.0
        %1602 = vmatpush1.xpose.msra.mxu0 0.0
        %1603 = vmatprep.subr.mxu0 0.0
        %1604 = vmatpush1.xpose.msra.mxu0 0.0
        %1605 = vmatprep.subr.mxu0 0.0
        %1606 = vmatpush1.xpose.msra.mxu0 0.0
        %1607 = vmatprep.subr.mxu0 0.0
        %1608 = vmatpush1.xpose.msra.mxu0 0.0
        %1609 = vmatprep.subr.mxu0 0.0
        %1610 = vmatpush1.xpose.msra.mxu0 0.0
        %1611 = vmatprep.subr.mxu0 0.0
        %1612 = vmatpush1.xpose.msra.mxu0 0.0
        %1613 = vmatprep.subr.mxu0 0.0
        %1614 = vmatpush1.xpose.msra.mxu0 0.0
        %1615 = vmatprep.subr.mxu0 0.0
        %1616 = vmatpush1.xpose.msra.mxu0 0.0
        %1617 = vmatprep.subr.mxu0 0.0
        %1618 = vmatpush1.xpose.msra.mxu0 0.0
        %1619 = vmatprep.subr.mxu0 0.0
        %1620 = vmatpush1.xpose.msra.mxu0 0.0
        %1621 = vmatprep.subr.mxu0 0.0
        %1622 = vmatpush1.xpose.msra.mxu0 0.0
        %1623 = vmatprep.subr.mxu0 0.0
        %1624 = vmatpush1.xpose.msra.mxu0 0.0
        %1625 = vmatprep.subr.mxu0 0.0
        %1626 = vmatpush1.xpose.msra.mxu0 0.0
        %1627 = vmatprep.subr.mxu0 0.0
        %1628 = vmatpush1.xpose.msra.mxu0 0.0
        %1629 = vmatprep.subr.mxu0 0.0
        %1630 = vmatpush1.xpose.msra.mxu0 0.0
        %1631 = vmatprep.mubr.f32.mxu0 0.0
        %1632 = vmatmul.mubr.f32.gmra.mrb[0].mxu0 %v1562
        %v1633 = vpop.f32.mrb[0].mxu0
        %v1634 = vadd.f32 0.0, %v1633
        %v1635 = vpop.f32.mrb[0].mxu0
        %1636 = vdwg.mxu0
        %v1637 = vsel %vm636, %v1634, -inf
        %1638 = vmax.xlane.f32.xlu0 %v1637
        %v1639 = vpop.xlane.xlu0 %1638
        %v1640 = vsub.f32 %v1634, %v1639
        %v1641 = vmul.f32 %v1640, 1.442695
        %v1642 = vpow.pop %v1641
        %v1643 = vsel %vm636, %v1642, 0.0
        %1644 = vadd.xlane.f32.xlu0 %v1643
        %v1645 = vpop.xlane.xlu0 %1644
        %v1646 = vrcp.pop %v1645
        %v1647 = vmul.f32 %v1645, %v1646
        %v1648 = vsub.f32 2.0, %v1647
        %v1649 = vmul.f32 %v1646, %v1648
        %v1650 = vmul.f32 %v1642, %v1649
        %v1652 = vsel %vm636, %v1650, 0
        %1654 = vmatprep.subr.mxu0 0.0
        %1655 = vmatpush1.msra.mxu0 %v1558
        %1656 = vmatprep.subr.mxu0 0.0
        %1657 = vmatpush1.msra.mxu0 0.0
        %1658 = vmatprep.subr.mxu0 0.0
        %1659 = vmatpush1.msra.mxu0 0.0
        %1660 = vmatprep.subr.mxu0 0.0
        %1661 = vmatpush1.msra.mxu0 0.0
        %1662 = vmatprep.subr.mxu0 0.0
        %1663 = vmatpush1.msra.mxu0 0.0
        %1664 = vmatprep.subr.mxu0 0.0
        %1665 = vmatpush1.msra.mxu0 0.0
        %1666 = vmatprep.subr.mxu0 0.0
        %1667 = vmatpush1.msra.mxu0 0.0
        %1668 = vmatprep.subr.mxu0 0.0
        %1669 = vmatpush1.msra.mxu0 0.0
        %1670 = vmatprep.subr.mxu0 0.0
        %1671 = vmatpush1.msra.mxu0 0.0
        %1672 = vmatprep.subr.mxu0 0.0
        %1673 = vmatpush1.msra.mxu0 0.0
        %1674 = vmatprep.subr.mxu0 0.0
        %1675 = vmatpush1.msra.mxu0 0.0
        %1676 = vmatprep.subr.mxu0 0.0
        %1677 = vmatpush1.msra.mxu0 0.0
        %1678 = vmatprep.subr.mxu0 0.0
        %1679 = vmatpush1.msra.mxu0 0.0
        %1680 = vmatprep.subr.mxu0 0.0
        %1681 = vmatpush1.msra.mxu0 0.0
        %1682 = vmatprep.subr.mxu0 0.0
        %1683 = vmatpush1.msra.mxu0 0.0
        %1684 = vmatprep.subr.mxu0 0.0
        %1685 = vmatpush1.msra.mxu0 0.0
        %1686 = vmatprep.subr.mxu0 0.0
        %1687 = vmatpush1.msra.mxu0 0.0
        %1688 = vmatprep.subr.mxu0 0.0
        %1689 = vmatpush1.msra.mxu0 0.0
        %1690 = vmatprep.subr.mxu0 0.0
        %1691 = vmatpush1.msra.mxu0 0.0
        %1692 = vmatprep.subr.mxu0 0.0
        %1693 = vmatpush1.msra.mxu0 0.0
        %1694 = vmatprep.subr.mxu0 0.0
        %1695 = vmatpush1.msra.mxu0 0.0
        %1696 = vmatprep.subr.mxu0 0.0
        %1697 = vmatpush1.msra.mxu0 0.0
        %1698 = vmatprep.subr.mxu0 0.0
        %1699 = vmatpush1.msra.mxu0 0.0
        %1700 = vmatprep.subr.mxu0 0.0
        %1701 = vmatpush1.msra.mxu0 0.0
        %1702 = vmatprep.subr.mxu0 0.0
        %1703 = vmatpush1.msra.mxu0 0.0
        %1704 = vmatprep.subr.mxu0 0.0
        %1705 = vmatpush1.msra.mxu0 0.0
        %1706 = vmatprep.subr.mxu0 0.0
        %1707 = vmatpush1.msra.mxu0 0.0
        %1708 = vmatprep.subr.mxu0 0.0
        %1709 = vmatpush1.msra.mxu0 0.0
        %1710 = vmatprep.subr.mxu0 0.0
        %1711 = vmatpush1.msra.mxu0 0.0
        %1712 = vmatprep.subr.mxu0 0.0
        %1713 = vmatpush1.msra.mxu0 0.0
        %1714 = vmatprep.subr.mxu0 0.0
        %1715 = vmatpush1.msra.mxu0 0.0
        %1716 = vmatprep.subr.mxu0 0.0
        %1717 = vmatpush1.msra.mxu0 0.0
        %1718 = vmatprep.mubr.f32.mxu0 0.0
        %1719 = vmatmul.mubr.f32.gmra.mrb[0].mxu0 %v1652
        %v1720 = vpop.f32.mrb[0].mxu0
        %v1721 = vadd.f32 0.0, %v1720
        %v1722 = vpop.f32.mrb[0].mxu0
        %1723 = vdwg.mxu0
        %v1725 = vsel %vm559, %v1721, 0
        %1727 = vmatprep.subr.mxu0 0.0
        %1728 = vmatpush1.msra.mxu0 %v1349
        %1729 = vmatprep.subr.mxu0 0.0
        %1730 = vmatpush1.msra.mxu0 %v1350
        %1731 = vmatprep.subr.mxu0 0.0
        %1732 = vmatpush1.msra.mxu0 0.0
        %1733 = vmatprep.subr.mxu0 0.0
        %1734 = vmatpush1.msra.mxu0 0.0
        %1735 = vmatprep.subr.mxu0 0.0
        %1736 = vmatpush1.msra.mxu0 0.0
        %1737 = vmatprep.subr.mxu0 0.0
        %1738 = vmatpush1.msra.mxu0 0.0
        %1739 = vmatprep.subr.mxu0 0.0
        %1740 = vmatpush1.msra.mxu0 0.0
        %1741 = vmatprep.subr.mxu0 0.0
        %1742 = vmatpush1.msra.mxu0 0.0
        %1743 = vmatprep.subr.mxu0 0.0
        %1744 = vmatpush1.msra.mxu0 0.0
        %1745 = vmatprep.subr.mxu0 0.0
        %1746 = vmatpush1.msra.mxu0 0.0
        %1747 = vmatprep.subr.mxu0 0.0
        %1748 = vmatpush1.msra.mxu0 0.0
        %1749 = vmatprep.subr.mxu0 0.0
        %1750 = vmatpush1.msra.mxu0 0.0
        %1751 = vmatprep.subr.mxu0 0.0
        %1752 = vmatpush1.msra.mxu0 0.0
        %1753 = vmatprep.subr.mxu0 0.0
        %1754 = vmatpush1.msra.mxu0 0.0
        %1755 = vmatprep.subr.mxu0 0.0
        %1756 = vmatpush1.msra.mxu0 0.0
        %1757 = vmatprep.subr.mxu0 0.0
        %1758 = vmatpush1.msra.mxu0 0.0
        %1759 = vmatprep.subr.mxu0 0.0
        %1760 = vmatpush1.msra.mxu0 0.0
        %1761 = vmatprep.subr.mxu0 0.0
        %1762 = vmatpush1.msra.mxu0 0.0
        %1763 = vmatprep.subr.mxu0 0.0
        %1764 = vmatpush1.msra.mxu0 0.0
        %1765 = vmatprep.subr.mxu0 0.0
        %1766 = vmatpush1.msra.mxu0 0.0
        %1767 = vmatprep.subr.mxu0 0.0
        %1768 = vmatpush1.msra.mxu0 0.0
        %1769 = vmatprep.subr.mxu0 0.0
        %1770 = vmatpush1.msra.mxu0 0.0
        %1771 = vmatprep.subr.mxu0 0.0
        %1772 = vmatpush1.msra.mxu0 0.0
        %1773 = vmatprep.subr.mxu0 0.0
        %1774 = vmatpush1.msra.mxu0 0.0
        %1775 = vmatprep.subr.mxu0 0.0
        %1776 = vmatpush1.msra.mxu0 0.0
        %1777 = vmatprep.subr.mxu0 0.0
        %1778 = vmatpush1.msra.mxu0 0.0
        %1779 = vmatprep.subr.mxu0 0.0
        %1780 = vmatpush1.msra.mxu0 0.0
        %1781 = vmatprep.subr.mxu0 0.0
        %1782 = vmatpush1.msra.mxu0 0.0
        %1783 = vmatprep.subr.mxu0 0.0
        %1784 = vmatpush1.msra.mxu0 0.0
        %1785 = vmatprep.subr.mxu0 0.0
        %1786 = vmatpush1.msra.mxu0 0.0
        %1787 = vmatprep.subr.mxu0 0.0
        %1788 = vmatpush1.msra.mxu0 0.0
        %1789 = vmatprep.subr.mxu0 0.0
        %1790 = vmatpush1.msra.mxu0 0.0
        %1791 = vmatprep.mubr.f32.mxu0 0.0
        %1792 = vmatmul.mubr.f32.gmra.mrb[0].mxu0 %v1725
        %v1793 = vpop.f32.mrb[0].mxu0
        %v1794 = vadd.f32 0.0, %v1793
        %v1795 = vpop.f32.mrb[0].mxu0
        %1796 = vdwg.mxu0
        %v1797 = vadd.f32 %v1294, %v1794
        %s1798 = scalar_lea.vmem [#allocation5], 384
        %v1799 = vld [vmem:[%s1798] sm:$0xff]
        %v1800 = vld [vmem:[%s1798 + $0x8] sm:$0xff]
        %v1801 = vld [vmem:[%s1798 + $0x10] sm:$0xff]
        %v1802 = vld [vmem:[%s1798 + $0x18] sm:$0xff]
        %v1803 = vld [vmem:[%s1798 + $0x20] sm:$0xff]
        %v1804 = vld [vmem:[%s1798 + $0x28] sm:$0xff]
        %v1805 = vld [vmem:[%s1798 + $0x30] sm:$0xff]
        %v1806 = vld [vmem:[%s1798 + $0x38] sm:$0xff]
        %v1807 = vld [vmem:[%s1798 + $0x40] sm:$0xff]
        %v1808 = vld [vmem:[%s1798 + $0x48] sm:$0xff]
        %v1809 = vld [vmem:[%s1798 + $0x50] sm:$0xff]
        %v1810 = vld [vmem:[%s1798 + $0x58] sm:$0xff]
        %v1811 = vld [vmem:[%s1798 + $0x60] sm:$0xff]
        %v1812 = vld [vmem:[%s1798 + $0x68] sm:$0xff]
        %v1813 = vld [vmem:[%s1798 + $0x70] sm:$0xff]
        %v1814 = vld [vmem:[%s1798 + $0x78] sm:$0xff]
        %s1815 = scalar_lea.vmem [#allocation7], 384
        %v1816 = vld [vmem:[%s1815] sm:$0xff]
        %v1817 = vld [vmem:[%s1815 + $0x8] sm:$0xff]
        %v1818 = vld [vmem:[%s1815 + $0x10] sm:$0xff]
        %v1819 = vld [vmem:[%s1815 + $0x18] sm:$0xff]
        %v1820 = vld [vmem:[%s1815 + $0x20] sm:$0xff]
        %v1821 = vld [vmem:[%s1815 + $0x28] sm:$0xff]
        %v1822 = vld [vmem:[%s1815 + $0x30] sm:$0xff]
        %v1823 = vld [vmem:[%s1815 + $0x38] sm:$0xff]
        %v1824 = vld [vmem:[%s1815 + $0x40] sm:$0xff]
        %v1825 = vld [vmem:[%s1815 + $0x48] sm:$0xff]
        %v1826 = vld [vmem:[%s1815 + $0x50] sm:$0xff]
        %v1827 = vld [vmem:[%s1815 + $0x58] sm:$0xff]
        %v1828 = vld [vmem:[%s1815 + $0x60] sm:$0xff]
        %v1829 = vld [vmem:[%s1815 + $0x68] sm:$0xff]
        %v1830 = vld [vmem:[%s1815 + $0x70] sm:$0xff]
        %v1831 = vld [vmem:[%s1815 + $0x78] sm:$0xff]
        %s1832 = scalar_lea.vmem [#allocation8], 384
        %v1833 = vld [vmem:[%s1832] sm:$0xff]
        %v1834 = vld [vmem:[%s1832 + $0x8] sm:$0xff]
        %v1835 = vld [vmem:[%s1832 + $0x10] sm:$0xff]
        %v1836 = vld [vmem:[%s1832 + $0x18] sm:$0xff]
        %v1837 = vld [vmem:[%s1832 + $0x20] sm:$0xff]
        %v1838 = vld [vmem:[%s1832 + $0x28] sm:$0xff]
        %v1839 = vld [vmem:[%s1832 + $0x30] sm:$0xff]
        %v1840 = vld [vmem:[%s1832 + $0x38] sm:$0xff]
        %v1841 = vld [vmem:[%s1832 + $0x40] sm:$0xff]
        %v1842 = vld [vmem:[%s1832 + $0x48] sm:$0xff]
        %v1843 = vld [vmem:[%s1832 + $0x50] sm:$0xff]
        %v1844 = vld [vmem:[%s1832 + $0x58] sm:$0xff]
        %v1845 = vld [vmem:[%s1832 + $0x60] sm:$0xff]
        %v1846 = vld [vmem:[%s1832 + $0x68] sm:$0xff]
        %v1847 = vld [vmem:[%s1832 + $0x70] sm:$0xff]
        %v1848 = vld [vmem:[%s1832 + $0x78] sm:$0xff]
        %s1849 = scalar_lea.vmem [#allocation10], 48
        %v1850 = vld [vmem:[%s1849] sm:$0xff]
        %v1851 = vld [vmem:[%s1849 + $0x8] sm:$0xff]
        %1852 = vmatprep.subr.mxu0 0.0
        %1853 = vmatpush1.msra.mxu0 %v1799
        %1854 = vmatprep.subr.mxu0 0.0
        %1855 = vmatpush1.msra.mxu0 %v1800
        %1856 = vmatprep.subr.mxu0 0.0
        %1857 = vmatpush1.msra.mxu0 %v1801
        %1858 = vmatprep.subr.mxu0 0.0
        %1859 = vmatpush1.msra.mxu0 %v1802
        %1860 = vmatprep.subr.mxu0 0.0
        %1861 = vmatpush1.msra.mxu0 %v1803
        %1862 = vmatprep.subr.mxu0 0.0
        %1863 = vmatpush1.msra.mxu0 %v1804
        %1864 = vmatprep.subr.mxu0 0.0
        %1865 = vmatpush1.msra.mxu0 %v1805
        %1866 = vmatprep.subr.mxu0 0.0
        %1867 = vmatpush1.msra.mxu0 %v1806
        %1868 = vmatprep.subr.mxu0 0.0
        %1869 = vmatpush1.msra.mxu0 %v1807
        %1870 = vmatprep.subr.mxu0 0.0
        %1871 = vmatpush1.msra.mxu0 %v1808
        %1872 = vmatprep.subr.mxu0 0.0
        %1873 = vmatpush1.msra.mxu0 %v1809
        %1874 = vmatprep.subr.mxu0 0.0
        %1875 = vmatpush1.msra.mxu0 %v1810
        %1876 = vmatprep.subr.mxu0 0.0
        %1877 = vmatpush1.msra.mxu0 %v1811
        %1878 = vmatprep.subr.mxu0 0.0
        %1879 = vmatpush1.msra.mxu0 %v1812
        %1880 = vmatprep.subr.mxu0 0.0
        %1881 = vmatpush1.msra.mxu0 %v1813
        %1882 = vmatprep.subr.mxu0 0.0
        %1883 = vmatpush1.msra.mxu0 %v1814
        %1884 = vmatprep.subr.mxu0 0.0
        %1885 = vmatpush1.msra.mxu0 0.0
        %1886 = vmatprep.subr.mxu0 0.0
        %1887 = vmatpush1.msra.mxu0 0.0
        %1888 = vmatprep.subr.mxu0 0.0
        %1889 = vmatpush1.msra.mxu0 0.0
        %1890 = vmatprep.subr.mxu0 0.0
        %1891 = vmatpush1.msra.mxu0 0.0
        %1892 = vmatprep.subr.mxu0 0.0
        %1893 = vmatpush1.msra.mxu0 0.0
        %1894 = vmatprep.subr.mxu0 0.0
        %1895 = vmatpush1.msra.mxu0 0.0
        %1896 = vmatprep.subr.mxu0 0.0
        %1897 = vmatpush1.msra.mxu0 0.0
        %1898 = vmatprep.subr.mxu0 0.0
        %1899 = vmatpush1.msra.mxu0 0.0
        %1900 = vmatprep.subr.mxu0 0.0
        %1901 = vmatpush1.msra.mxu0 0.0
        %1902 = vmatprep.subr.mxu0 0.0
        %1903 = vmatpush1.msra.mxu0 0.0
        %1904 = vmatprep.subr.mxu0 0.0
        %1905 = vmatpush1.msra.mxu0 0.0
        %1906 = vmatprep.subr.mxu0 0.0
        %1907 = vmatpush1.msra.mxu0 0.0
        %1908 = vmatprep.subr.mxu0 0.0
        %1909 = vmatpush1.msra.mxu0 0.0
        %1910 = vmatprep.subr.mxu0 0.0
        %1911 = vmatpush1.msra.mxu0 0.0
        %1912 = vmatprep.subr.mxu0 0.0
        %1913 = vmatpush1.msra.mxu0 0.0
        %1914 = vmatprep.subr.mxu0 0.0
        %1915 = vmatpush1.msra.mxu0 0.0
        %1916 = vmatprep.mubr.f32.mxu0 0.0
        %1917 = vmatmul.mubr.f32.gmra.mrb[0].mxu0 %v298
        %v1918 = vpop.f32.mrb[0].mxu0
        %v1919 = vadd.f32 0.0, %v1918
        %v1920 = vpop.f32.mrb[0].mxu0
        %1921 = vdwg.mxu0
        %1922 = vmatprep.subr.mxu0 0.0
        %1923 = vmatpush1.msra.mxu0 %v1816
        %1924 = vmatprep.subr.mxu0 0.0
        %1925 = vmatpush1.msra.mxu0 %v1817
        %1926 = vmatprep.subr.mxu0 0.0
        %1927 = vmatpush1.msra.mxu0 %v1818
        %1928 = vmatprep.subr.mxu0 0.0
        %1929 = vmatpush1.msra.mxu0 %v1819
        %1930 = vmatprep.subr.mxu0 0.0
        %1931 = vmatpush1.msra.mxu0 %v1820
        %1932 = vmatprep.subr.mxu0 0.0
        %1933 = vmatpush1.msra.mxu0 %v1821
        %1934 = vmatprep.subr.mxu0 0.0
        %1935 = vmatpush1.msra.mxu0 %v1822
        %1936 = vmatprep.subr.mxu0 0.0
        %1937 = vmatpush1.msra.mxu0 %v1823
        %1938 = vmatprep.subr.mxu0 0.0
        %1939 = vmatpush1.msra.mxu0 %v1824
        %1940 = vmatprep.subr.mxu0 0.0
        %1941 = vmatpush1.msra.mxu0 %v1825
        %1942 = vmatprep.subr.mxu0 0.0
        %1943 = vmatpush1.msra.mxu0 %v1826
        %1944 = vmatprep.subr.mxu0 0.0
        %1945 = vmatpush1.msra.mxu0 %v1827
        %1946 = vmatprep.subr.mxu0 0.0
        %1947 = vmatpush1.msra.mxu0 %v1828
        %1948 = vmatprep.subr.mxu0 0.0
        %1949 = vmatpush1.msra.mxu0 %v1829
        %1950 = vmatprep.subr.mxu0 0.0
        %1951 = vmatpush1.msra.mxu0 %v1830
        %1952 = vmatprep.subr.mxu0 0.0
        %1953 = vmatpush1.msra.mxu0 %v1831
        %1954 = vmatprep.subr.mxu0 0.0
        %1955 = vmatpush1.msra.mxu0 0.0
        %1956 = vmatprep.subr.mxu0 0.0
        %1957 = vmatpush1.msra.mxu0 0.0
        %1958 = vmatprep.subr.mxu0 0.0
        %1959 = vmatpush1.msra.mxu0 0.0
        %1960 = vmatprep.subr.mxu0 0.0
        %1961 = vmatpush1.msra.mxu0 0.0
        %1962 = vmatprep.subr.mxu0 0.0
        %1963 = vmatpush1.msra.mxu0 0.0
        %1964 = vmatprep.subr.mxu0 0.0
        %1965 = vmatpush1.msra.mxu0 0.0
        %1966 = vmatprep.subr.mxu0 0.0
        %1967 = vmatpush1.msra.mxu0 0.0
        %1968 = vmatprep.subr.mxu0 0.0
        %1969 = vmatpush1.msra.mxu0 0.0
        %1970 = vmatprep.subr.mxu0 0.0
        %1971 = vmatpush1.msra.mxu0 0.0
        %1972 = vmatprep.subr.mxu0 0.0
        %1973 = vmatpush1.msra.mxu0 0.0
        %1974 = vmatprep.subr.mxu0 0.0
        %1975 = vmatpush1.msra.mxu0 0.0
        %1976 = vmatprep.subr.mxu0 0.0
        %1977 = vmatpush1.msra.mxu0 0.0
        %1978 = vmatprep.subr.mxu0 0.0
        %1979 = vmatpush1.msra.mxu0 0.0
        %1980 = vmatprep.subr.mxu0 0.0
        %1981 = vmatpush1.msra.mxu0 0.0
        %1982 = vmatprep.subr.mxu0 0.0
        %1983 = vmatpush1.msra.mxu0 0.0
        %1984 = vmatprep.subr.mxu0 0.0
        %1985 = vmatpush1.msra.mxu0 0.0
        %1986 = vmatprep.mubr.f32.mxu0 0.0
        %1987 = vmatmul.mubr.f32.gmra.mrb[0].mxu0 %v298
        %v1988 = vpop.f32.mrb[0].mxu0
        %v1989 = vadd.f32 0.0, %v1988
        %v1990 = vpop.f32.mrb[0].mxu0
        %1991 = vdwg.mxu0
        %1992 = vmatprep.subr.mxu0 0.0
        %1993 = vmatpush1.msra.mxu0 %v1833
        %1994 = vmatprep.subr.mxu0 0.0
        %1995 = vmatpush1.msra.mxu0 %v1834
        %1996 = vmatprep.subr.mxu0 0.0
        %1997 = vmatpush1.msra.mxu0 %v1835
        %1998 = vmatprep.subr.mxu0 0.0
        %1999 = vmatpush1.msra.mxu0 %v1836
        %2000 = vmatprep.subr.mxu0 0.0
        %2001 = vmatpush1.msra.mxu0 %v1837
        %2002 = vmatprep.subr.mxu0 0.0
        %2003 = vmatpush1.msra.mxu0 %v1838
        %2004 = vmatprep.subr.mxu0 0.0
        %2005 = vmatpush1.msra.mxu0 %v1839
        %2006 = vmatprep.subr.mxu0 0.0
        %2007 = vmatpush1.msra.mxu0 %v1840
        %2008 = vmatprep.subr.mxu0 0.0
        %2009 = vmatpush1.msra.mxu0 %v1841
        %2010 = vmatprep.subr.mxu0 0.0
        %2011 = vmatpush1.msra.mxu0 %v1842
        %2012 = vmatprep.subr.mxu0 0.0
        %2013 = vmatpush1.msra.mxu0 %v1843
        %2014 = vmatprep.subr.mxu0 0.0
        %2015 = vmatpush1.msra.mxu0 %v1844
        %2016 = vmatprep.subr.mxu0 0.0
        %2017 = vmatpush1.msra.mxu0 %v1845
        %2018 = vmatprep.subr.mxu0 0.0
        %2019 = vmatpush1.msra.mxu0 %v1846
        %2020 = vmatprep.subr.mxu0 0.0
        %2021 = vmatpush1.msra.mxu0 %v1847
        %2022 = vmatprep.subr.mxu0 0.0
        %2023 = vmatpush1.msra.mxu0 %v1848
        %2024 = vmatprep.subr.mxu0 0.0
        %2025 = vmatpush1.msra.mxu0 0.0
        %2026 = vmatprep.subr.mxu0 0.0
        %2027 = vmatpush1.msra.mxu0 0.0
        %2028 = vmatprep.subr.mxu0 0.0
        %2029 = vmatpush1.msra.mxu0 0.0
        %2030 = vmatprep.subr.mxu0 0.0
        %2031 = vmatpush1.msra.mxu0 0.0
        %2032 = vmatprep.subr.mxu0 0.0
        %2033 = vmatpush1.msra.mxu0 0.0
        %2034 = vmatprep.subr.mxu0 0.0
        %2035 = vmatpush1.msra.mxu0 0.0
        %2036 = vmatprep.subr.mxu0 0.0
        %2037 = vmatpush1.msra.mxu0 0.0
        %2038 = vmatprep.subr.mxu0 0.0
        %2039 = vmatpush1.msra.mxu0 0.0
        %2040 = vmatprep.subr.mxu0 0.0
        %2041 = vmatpush1.msra.mxu0 0.0
        %2042 = vmatprep.subr.mxu0 0.0
        %2043 = vmatpush1.msra.mxu0 0.0
        %2044 = vmatprep.subr.mxu0 0.0
        %2045 = vmatpush1.msra.mxu0 0.0
        %2046 = vmatprep.subr.mxu0 0.0
        %2047 = vmatpush1.msra.mxu0 0.0
        %2048 = vmatprep.subr.mxu0 0.0
        %2049 = vmatpush1.msra.mxu0 0.0
        %2050 = vmatprep.subr.mxu0 0.0
        %2051 = vmatpush1.msra.mxu0 0.0
        %2052 = vmatprep.subr.mxu0 0.0
        %2053 = vmatpush1.msra.mxu0 0.0
        %2054 = vmatprep.subr.mxu0 0.0
        %2055 = vmatpush1.msra.mxu0 0.0
        %2056 = vmatprep.mubr.f32.mxu0 0.0
        %2057 = vmatmul.mubr.f32.gmra.mrb[0].mxu0 %v298
        %v2058 = vpop.f32.mrb[0].mxu0
        %v2059 = vadd.f32 0.0, %v2058
        %v2060 = vpop.f32.mrb[0].mxu0
        %2061 = vdwg.mxu0
        %v2063 = vsel %vm559, %v1919, 0
        %v2066 = vsel %vm559, %v1989, 0
        %2068 = vmatprep.subr.mxu0 0.0
        %2069 = vmatpush1.xpose.msra.mxu0 %v2066
        %2070 = vmatprep.subr.mxu0 0.0
        %2071 = vmatpush1.xpose.msra.mxu0 0.0
        %2072 = vmatprep.subr.mxu0 0.0
        %2073 = vmatpush1.xpose.msra.mxu0 0.0
        %2074 = vmatprep.subr.mxu0 0.0
        %2075 = vmatpush1.xpose.msra.mxu0 0.0
        %2076 = vmatprep.subr.mxu0 0.0
        %2077 = vmatpush1.xpose.msra.mxu0 0.0
        %2078 = vmatprep.subr.mxu0 0.0
        %2079 = vmatpush1.xpose.msra.mxu0 0.0
        %2080 = vmatprep.subr.mxu0 0.0
        %2081 = vmatpush1.xpose.msra.mxu0 0.0
        %2082 = vmatprep.subr.mxu0 0.0
        %2083 = vmatpush1.xpose.msra.mxu0 0.0
        %2084 = vmatprep.subr.mxu0 0.0
        %2085 = vmatpush1.xpose.msra.mxu0 0.0
        %2086 = vmatprep.subr.mxu0 0.0
        %2087 = vmatpush1.xpose.msra.mxu0 0.0
        %2088 = vmatprep.subr.mxu0 0.0
        %2089 = vmatpush1.xpose.msra.mxu0 0.0
        %2090 = vmatprep.subr.mxu0 0.0
        %2091 = vmatpush1.xpose.msra.mxu0 0.0
        %2092 = vmatprep.subr.mxu0 0.0
        %2093 = vmatpush1.xpose.msra.mxu0 0.0
        %2094 = vmatprep.subr.mxu0 0.0
        %2095 = vmatpush1.xpose.msra.mxu0 0.0
        %2096 = vmatprep.subr.mxu0 0.0
        %2097 = vmatpush1.xpose.msra.mxu0 0.0
        %2098 = vmatprep.subr.mxu0 0.0
        %2099 = vmatpush1.xpose.msra.mxu0 0.0
        %2100 = vmatprep.subr.mxu0 0.0
        %2101 = vmatpush1.xpose.msra.mxu0 0.0
        %2102 = vmatprep.subr.mxu0 0.0
        %2103 = vmatpush1.xpose.msra.mxu0 0.0
        %2104 = vmatprep.subr.mxu0 0.0
        %2105 = vmatpush1.xpose.msra.mxu0 0.0
        %2106 = vmatprep.subr.mxu0 0.0
        %2107 = vmatpush1.xpose.msra.mxu0 0.0
        %2108 = vmatprep.subr.mxu0 0.0
        %2109 = vmatpush1.xpose.msra.mxu0 0.0
        %2110 = vmatprep.subr.mxu0 0.0
        %2111 = vmatpush1.xpose.msra.mxu0 0.0
        %2112 = vmatprep.subr.mxu0 0.0
        %2113 = vmatpush1.xpose.msra.mxu0 0.0
        %2114 = vmatprep.subr.mxu0 0.0
        %2115 = vmatpush1.xpose.msra.mxu0 0.0
        %2116 = vmatprep.subr.mxu0 0.0
        %2117 = vmatpush1.xpose.msra.mxu0 0.0
        %2118 = vmatprep.subr.mxu0 0.0
        %2119 = vmatpush1.xpose.msra.mxu0 0.0
        %2120 = vmatprep.subr.mxu0 0.0
        %2121 = vmatpush1.xpose.msra.mxu0 0.0
        %2122 = vmatprep.subr.mxu0 0.0
        %2123 = vmatpush1.xpose.msra.mxu0 0.0
        %2124 = vmatprep.subr.mxu0 0.0
        %2125 = vmatpush1.xpose.msra.mxu0 0.0
        %2126 = vmatprep.subr.mxu0 0.0
        %2127 = vmatpush1.xpose.msra.mxu0 0.0
        %2128 = vmatprep.subr.mxu0 0.0
        %2129 = vmatpush1.xpose.msra.mxu0 0.0
        %2130 = vmatprep.subr.mxu0 0.0
        %2131 = vmatpush1.xpose.msra.mxu0 0.0
        %2132 = vmatprep.mubr.f32.mxu0 0.0
        %2133 = vmatmul.mubr.f32.gmra.mrb[0].mxu0 %v2063
        %v2134 = vpop.f32.mrb[0].mxu0
        %v2135 = vadd.f32 0.0, %v2134
        %v2136 = vpop.f32.mrb[0].mxu0
        %2137 = vdwg.mxu0
        %v2138 = vsel %vm636, %v2135, -inf
        %2139 = vmax.xlane.f32.xlu0 %v2138
        %v2140 = vpop.xlane.xlu0 %2139
        %v2141 = vsub.f32 %v2135, %v2140
        %v2142 = vmul.f32 %v2141, 1.442695
        %v2143 = vpow.pop %v2142
        %v2144 = vsel %vm636, %v2143, 0.0
        %2145 = vadd.xlane.f32.xlu0 %v2144
        %v2146 = vpop.xlane.xlu0 %2145
        %v2147 = vrcp.pop %v2146
        %v2148 = vmul.f32 %v2146, %v2147
        %v2149 = vsub.f32 2.0, %v2148
        %v2150 = vmul.f32 %v2147, %v2149
        %v2151 = vmul.f32 %v2143, %v2150
        %v2153 = vsel %vm636, %v2151, 0
        %2155 = vmatprep.subr.mxu0 0.0
        %2156 = vmatpush1.msra.mxu0 %v2059
        %2157 = vmatprep.subr.mxu0 0.0
        %2158 = vmatpush1.msra.mxu0 0.0
        %2159 = vmatprep.subr.mxu0 0.0
        %2160 = vmatpush1.msra.mxu0 0.0
        %2161 = vmatprep.subr.mxu0 0.0
        %2162 = vmatpush1.msra.mxu0 0.0
        %2163 = vmatprep.subr.mxu0 0.0
        %2164 = vmatpush1.msra.mxu0 0.0
        %2165 = vmatprep.subr.mxu0 0.0
        %2166 = vmatpush1.msra.mxu0 0.0
        %2167 = vmatprep.subr.mxu0 0.0
        %2168 = vmatpush1.msra.mxu0 0.0
        %2169 = vmatprep.subr.mxu0 0.0
        %2170 = vmatpush1.msra.mxu0 0.0
        %2171 = vmatprep.subr.mxu0 0.0
        %2172 = vmatpush1.msra.mxu0 0.0
        %2173 = vmatprep.subr.mxu0 0.0
        %2174 = vmatpush1.msra.mxu0 0.0
        %2175 = vmatprep.subr.mxu0 0.0
        %2176 = vmatpush1.msra.mxu0 0.0
        %2177 = vmatprep.subr.mxu0 0.0
        %2178 = vmatpush1.msra.mxu0 0.0
        %2179 = vmatprep.subr.mxu0 0.0
        %2180 = vmatpush1.msra.mxu0 0.0
        %2181 = vmatprep.subr.mxu0 0.0
        %2182 = vmatpush1.msra.mxu0 0.0
        %2183 = vmatprep.subr.mxu0 0.0
        %2184 = vmatpush1.msra.mxu0 0.0
        %2185 = vmatprep.subr.mxu0 0.0
        %2186 = vmatpush1.msra.mxu0 0.0
        %2187 = vmatprep.subr.mxu0 0.0
        %2188 = vmatpush1.msra.mxu0 0.0
        %2189 = vmatprep.subr.mxu0 0.0
        %2190 = vmatpush1.msra.mxu0 0.0
        %2191 = vmatprep.subr.mxu0 0.0
        %2192 = vmatpush1.msra.mxu0 0.0
        %2193 = vmatprep.subr.mxu0 0.0
        %2194 = vmatpush1.msra.mxu0 0.0
        %2195 = vmatprep.subr.mxu0 0.0
        %2196 = vmatpush1.msra.mxu0 0.0
        %2197 = vmatprep.subr.mxu0 0.0
        %2198 = vmatpush1.msra.mxu0 0.0
        %2199 = vmatprep.subr.mxu0 0.0
        %2200 = vmatpush1.msra.mxu0 0.0
        %2201 = vmatprep.subr.mxu0 0.0
        %2202 = vmatpush1.msra.mxu0 0.0
        %2203 = vmatprep.subr.mxu0 0.0
        %2204 = vmatpush1.msra.mxu0 0.0
        %2205 = vmatprep.subr.mxu0 0.0
        %2206 = vmatpush1.msra.mxu0 0.0
        %2207 = vmatprep.subr.mxu0 0.0
        %2208 = vmatpush1.msra.mxu0 0.0
        %2209 = vmatprep.subr.mxu0 0.0
        %2210 = vmatpush1.msra.mxu0 0.0
        %2211 = vmatprep.subr.mxu0 0.0
        %2212 = vmatpush1.msra.mxu0 0.0
        %2213 = vmatprep.subr.mxu0 0.0
        %2214 = vmatpush1.msra.mxu0 0.0
        %2215 = vmatprep.subr.mxu0 0.0
        %2216 = vmatpush1.msra.mxu0 0.0
        %2217 = vmatprep.subr.mxu0 0.0
        %2218 = vmatpush1.msra.mxu0 0.0
        %2219 = vmatprep.mubr.f32.mxu0 0.0
        %2220 = vmatmul.mubr.f32.gmra.mrb[0].mxu0 %v2153
        %v2221 = vpop.f32.mrb[0].mxu0
        %v2222 = vadd.f32 0.0, %v2221
        %v2223 = vpop.f32.mrb[0].mxu0
        %2224 = vdwg.mxu0
        %v2226 = vsel %vm559, %v2222, 0
        %2228 = vmatprep.subr.mxu0 0.0
        %2229 = vmatpush1.msra.mxu0 %v1850
        %2230 = vmatprep.subr.mxu0 0.0
        %2231 = vmatpush1.msra.mxu0 %v1851
        %2232 = vmatprep.subr.mxu0 0.0
        %2233 = vmatpush1.msra.mxu0 0.0
        %2234 = vmatprep.subr.mxu0 0.0
        %2235 = vmatpush1.msra.mxu0 0.0
        %2236 = vmatprep.subr.mxu0 0.0
        %2237 = vmatpush1.msra.mxu0 0.0
        %2238 = vmatprep.subr.mxu0 0.0
        %2239 = vmatpush1.msra.mxu0 0.0
        %2240 = vmatprep.subr.mxu0 0.0
        %2241 = vmatpush1.msra.mxu0 0.0
        %2242 = vmatprep.subr.mxu0 0.0
        %2243 = vmatpush1.msra.mxu0 0.0
        %2244 = vmatprep.subr.mxu0 0.0
        %2245 = vmatpush1.msra.mxu0 0.0
        %2246 = vmatprep.subr.mxu0 0.0
        %2247 = vmatpush1.msra.mxu0 0.0
        %2248 = vmatprep.subr.mxu0 0.0
        %2249 = vmatpush1.msra.mxu0 0.0
        %2250 = vmatprep.subr.mxu0 0.0
        %2251 = vmatpush1.msra.mxu0 0.0
        %2252 = vmatprep.subr.mxu0 0.0
        %2253 = vmatpush1.msra.mxu0 0.0
        %2254 = vmatprep.subr.mxu0 0.0
        %2255 = vmatpush1.msra.mxu0 0.0
        %2256 = vmatprep.subr.mxu0 0.0
        %2257 = vmatpush1.msra.mxu0 0.0
        %2258 = vmatprep.subr.mxu0 0.0
        %2259 = vmatpush1.msra.mxu0 0.0
        %2260 = vmatprep.subr.mxu0 0.0
        %2261 = vmatpush1.msra.mxu0 0.0
        %2262 = vmatprep.subr.mxu0 0.0
        %2263 = vmatpush1.msra.mxu0 0.0
        %2264 = vmatprep.subr.mxu0 0.0
        %2265 = vmatpush1.msra.mxu0 0.0
        %2266 = vmatprep.subr.mxu0 0.0
        %2267 = vmatpush1.msra.mxu0 0.0
        %2268 = vmatprep.subr.mxu0 0.0
        %2269 = vmatpush1.msra.mxu0 0.0
        %2270 = vmatprep.subr.mxu0 0.0
        %2271 = vmatpush1.msra.mxu0 0.0
        %2272 = vmatprep.subr.mxu0 0.0
        %2273 = vmatpush1.msra.mxu0 0.0
        %2274 = vmatprep.subr.mxu0 0.0
        %2275 = vmatpush1.msra.mxu0 0.0
        %2276 = vmatprep.subr.mxu0 0.0
        %2277 = vmatpush1.msra.mxu0 0.0
        %2278 = vmatprep.subr.mxu0 0.0
        %2279 = vmatpush1.msra.mxu0 0.0
        %2280 = vmatprep.subr.mxu0 0.0
        %2281 = vmatpush1.msra.mxu0 0.0
        %2282 = vmatprep.subr.mxu0 0.0
        %2283 = vmatpush1.msra.mxu0 0.0
        %2284 = vmatprep.subr.mxu0 0.0
        %2285 = vmatpush1.msra.mxu0 0.0
        %2286 = vmatprep.subr.mxu0 0.0
        %2287 = vmatpush1.msra.mxu0 0.0
        %2288 = vmatprep.subr.mxu0 0.0
        %2289 = vmatpush1.msra.mxu0 0.0
        %2290 = vmatprep.subr.mxu0 0.0
        %2291 = vmatpush1.msra.mxu0 0.0
        %2292 = vmatprep.mubr.f32.mxu0 0.0
        %2293 = vmatmul.mubr.f32.gmra.mrb[0].mxu0 %v2226
        %v2294 = vpop.f32.mrb[0].mxu0
        %v2295 = vadd.f32 0.0, %v2294
        %v2296 = vpop.f32.mrb[0].mxu0
        %2297 = vdwg.mxu0
        %v2298 = vadd.f32 %v1797, %v2295
        %2299 = vst [vmem:[%s297] sm:$0xff] %v2298
        %s2300 = sand.u32 %s142, 1
        %s2301 = scalar_lea.sflag [#allocation4], %s2300
        %s2302 = sand.u32 %s142, 1
        %s2303 = smul.addr %s2302, 8
        %s2304 = scalar_lea.vmem [#allocation11], %s2303
        // Predicated region
        $region61: #{tpu_custom_call.1} parent=39 // pred_check
          %p2305 = pneg %p152
        $region62: #{tpu_custom_call.1} parent=39 // pred_check_branch
          %2307 = sbr.rel (%p2305) target = $region64
        $region63: #{tpu_custom_call.1} parent=39 // pred_region
          %s2309 = ssub.s32 128, 128
          %2310 = vsyncadd %s2301, %s2309
          %s2311 = smul.addr %s24, 128
          %s2312 = scalar_lea.hbm %s5, %s2311
          %s2314 = sshll.u32 %s2304, 4
          %s2315 = int_to_ptr.vmem [resolvable:$true] %s2314
          %2317 = dma.vmem_to_hbm [thread:$0]  %s2315, 128, %s2312, %s2301
        $region64: #{tpu_custom_call.1} parent=39 // pred_fallthru
          _
      $region40: #{tpu_custom_call.1} parent=5 // pred_fallthru
        _
      %p2318 = scmp.le.s32.totalorder 2, %s19
      // Predicated region
      $region65: #{tpu_custom_call.1} parent=5 // pred_check
        %p2319 = pneg %p2318
      $region66: #{tpu_custom_call.1} parent=5 // pred_check_branch
        %2321 = sbr.rel (%p2319) target = $region68
      $region67: #{tpu_custom_call.1} parent=5 // pred_region
        %s2322 = ssub.s32 %s19, 2
        // Predicated region
        $region69: #{tpu_custom_call.1} parent=67 // pred_check
          %p2323 = pneg %p158
        $region70: #{tpu_custom_call.1} parent=67 // pred_check_branch
          %2325 = sbr.rel (%p2323) target = $region72
        $region71: #{tpu_custom_call.1} parent=67 // pred_region
          %s2326 = sand.u32 %s143, 1
          %s2327 = scalar_lea.sflag [#allocation4], %s2326
          %s2328 = sand.u32 %s143, 1
          %s2329 = smul.addr %s2328, 8
          %s2330 = scalar_lea.vmem [#allocation11], %s2329
          %2331 = dma.done %s2327, 128
        $region72: #{tpu_custom_call.1} parent=67 // pred_fallthru
          _
      $region68: #{tpu_custom_call.1} parent=5 // pred_fallthru
        _
    $region6: #{tpu_custom_call.1} parent=1 // loop_footer
      %s23 = sadd.s32 1, %s19
    $region7: #{tpu_custom_call.1} parent=1 // loop_footer_branch
      %18 = sbr.rel target = $region3
    $region8: #{tpu_custom_call.1} parent=1 // loop_exit
      _
    %2332 = vsyncpa [#allocation3], 1
    %s2333 = scalar_lea.sflag [#allocation3], 1
    %2334 = vsyncpa %s2333, 1
    %2335 = vsyncpa [#allocation6], 1
    %2336 = vsyncpa [#allocation9], 1
    %2337 = vsyncpa [#allocation4], 1
    %s2338 = scalar_lea.sflag [#allocation4], 1
    %2339 = vsyncpa %s2338, 1

</llo_original>
